<compile_context>
chip_gen: v7x
topology: tpu7x:2x2x1
jax: 0.10.0
libtpu: 0.0.40
codegen_flags: <defaults>
</compile_context>

<pallas_src>
import numpy as np
import jax
import jax.numpy as jnp
from jax import lax
from jax.experimental import pallas as pl
from jax.experimental.pallas import tpu as pltpu


# ------------------------- structure-matrix builders --------------------------
def _build_row_select(h_in, h_out, n):
    """(3, n*h_out, n*h_in) 0/1 matrices: vertical tap + stride-2 + zero pad."""
    s = np.zeros((3, h_out, h_in), np.float32)
    for ky in range(3):
        for oy in range(h_out):
            iy = 2 * oy + ky - 1
            if 0 <= iy < h_in:
                s[ky, oy, iy] = 1.0
    eye = np.eye(n, dtype=np.float32)
    return jnp.asarray(np.stack([np.kron(eye, s[k]) for k in range(3)]))


def _build_col_weights(w, w_in, w_out):
    """w: (3, 3, Cin, Cout) [ky, kx, ci, co] -> (3, w_in*Cin, w_out*Cout).

    M[ky, ix*Cin+ci, ox*Cout+co] = sum_kx 1[ix == 2*ox+kx-1, valid] * w[ky,kx,ci,co]
    i.e. horizontal taps + stride-2 + zero pad folded into the weight matrix.
    """
    g = np.zeros((3, w_out, w_in), np.float32)
    for kx in range(3):
        for ox in range(w_out):
            ix = 2 * ox + kx - 1
            if 0 <= ix < w_in:
                g[kx, ox, ix] = 1.0
    cin, cout = w.shape[2], w.shape[3]
    m = jnp.einsum('xoi,yxcd->yicod', jnp.asarray(g), w)
    return m.reshape(3, w_in * cin, w_out * cout)


# --------------------------------- kernel -------------------------------------
def _p6p7_kernel(x_ref, s1_ref, m1_ref, b1_ref, s2_ref, m2_ref, b2_ref,
                 p6_ref, p7_ref):
    # x_ref : (N*H,  W*Cin)        input c5 in row-major (n,y) x (x,c) layout
    # s1/s2 : (3, rows_out, rows_in)  0/1 row-selection (vertical tap + stride)
    # m1/m2 : (3, cols_in, cols_out)  weight-folded horizontal im2col matrices
    # b1/b2 : (1, cols_out)           bias tiled over output width
    # p6_ref: (N*Ho1, Wo1*Cout)   p7_ref: (N*Ho2, Wo2*Cout)
    x = x_ref[...]

    acc1 = jnp.zeros(p6_ref.shape, jnp.float32)
    for ky in range(3):
        rows = jnp.dot(s1_ref[ky], x, preferred_element_type=jnp.float32)
        acc1 = acc1 + jnp.dot(rows, m1_ref[ky],
                              preferred_element_type=jnp.float32)
    p6 = acc1 + b1_ref[...]
    p6_ref[...] = p6

    r = jnp.maximum(p6, 0.0)                      # relu(p6), stays in VMEM
    acc2 = jnp.zeros(p7_ref.shape, jnp.float32)
    for ky in range(3):
        rows = jnp.dot(s2_ref[ky], r, preferred_element_type=jnp.float32)
        acc2 = acc2 + jnp.dot(rows, m2_ref[ky],
                              preferred_element_type=jnp.float32)
    p7_ref[...] = acc2 + b2_ref[...]


# -------------------------------- forward -------------------------------------
def last_level_p6p7_forward(c5, params):
    """c5: (N, Cin, H, W) NCHW.  Returns (p6, p7) in NCHW, like the PyTorch module."""
    n, cin, hi, wi = c5.shape
    cout = params["w1"].shape[-1]
    ho1, wo1 = (hi - 1) // 2 + 1, (wi - 1) // 2 + 1
    ho2, wo2 = (ho1 - 1) // 2 + 1, (wo1 - 1) // 2 + 1

    # Constant structure matrices (folded once; constants under jit).
    s1 = _build_row_select(hi, ho1, n)
    m1 = _build_col_weights(params["w1"], wi, wo1)
    s2 = _build_row_select(ho1, ho2, n)
    m2 = _build_col_weights(params["w2"], wo1, wo2)
    b1_row = jnp.tile(params["b1"], wo1)[None, :]
    b2_row = jnp.tile(params["b2"], wo2)[None, :]

    # NCHW -> 2-D "rows=(n,y), cols=(x,c)" layout (one-time boundary glue).
    x_mat = jnp.transpose(c5, (0, 2, 3, 1)).reshape(n * hi, wi * cin)

    p6_mat, p7_mat = pl.pallas_call(
        _p6p7_kernel,
        out_shape=(jax.ShapeDtypeStruct((n * ho1, wo1 * cout), jnp.float32),
                   jax.ShapeDtypeStruct((n * ho2, wo2 * cout), jnp.float32)),
        grid=(1,),
        in_specs=[
            pl.BlockSpec((n * hi, wi * cin), lambda i: (0, 0)),
            pl.BlockSpec((3, n * ho1, n * hi), lambda i: (0, 0, 0)),
            pl.BlockSpec((3, wi * cin, wo1 * cout), lambda i: (0, 0, 0)),
            pl.BlockSpec((1, wo1 * cout), lambda i: (0, 0)),
            pl.BlockSpec((3, n * ho2, n * ho1), lambda i: (0, 0, 0)),
            pl.BlockSpec((3, wo1 * cout, wo2 * cout), lambda i: (0, 0, 0)),
            pl.BlockSpec((1, wo2 * cout), lambda i: (0, 0)),
        ],
        out_specs=(pl.BlockSpec((n * ho1, wo1 * cout), lambda i: (0, 0)),
                   pl.BlockSpec((n * ho2, wo2 * cout), lambda i: (0, 0))),
        compiler_params=pltpu.CompilerParams(
            dimension_semantics=("arbitrary",)),
    )(x_mat, s1, m1, b1_row, s2, m2, b2_row)

    # 2-D layout -> NCHW (boundary glue).
    p6 = jnp.transpose(p6_mat.reshape(n, ho1, wo1, cout), (0, 3, 1, 2))
    p7 = jnp.transpose(p7_mat.reshape(n, ho2, wo2, cout), (0, 3, 1, 2))
    return p6, p7


# ------------------------------ pure-JAX reference -----------------------------
def _reference(c5, params):
    dn = ('NCHW', 'HWIO', 'NCHW')
    p6 = lax.conv_general_dilated(
        c5, params["w1"], window_strides=(2, 2), padding=((1, 1), (1, 1)),
        dimension_numbers=dn, precision=lax.Precision.HIGHEST)
    p6 = p6 + params["b1"][None, :, None, None]
    p7 = lax.conv_general_dilated(
        jax.nn.relu(p6), params["w2"], window_strides=(2, 2),
        padding=((1, 1), (1, 1)), dimension_numbers=dn,
        precision=lax.Precision.HIGHEST)
    p7 = p7 + params["b2"][None, :, None, None]
    return p6, p7


# ----------------------------------- main --------------------------------------
if __name__ == "__main__":
    N, CIN, COUT, H, W = 2, 8, 32, 16, 16

    key = jax.random.PRNGKey(0)
    kx, kw1, kw2, kb1, kb2 = jax.random.split(key, 5)

    c5 = jax.random.normal(kx, (N, CIN, H, W), jnp.float32)

    std1 = float(np.sqrt(2.0 / (9 * CIN)))
    std2 = float(np.sqrt(2.0 / (9 * COUT)))
    params = {
        # weights stored as (ky, kx, Cin, Cout) == HWIO
        "w1": std1 * jax.random.normal(kw1, (3, 3, CIN, COUT), jnp.float32),
        "w2": std2 * jax.random.normal(kw2, (3, 3, COUT, COUT), jnp.float32),
        # NOTE: c2_xavier_fill zeroes the biases; small non-zero biases here
        # exercise the bias-add path (forward semantics are identical).
        "b1": 0.1 * jax.random.normal(kb1, (COUT,), jnp.float32),
        "b2": 0.1 * jax.random.normal(kb2, (COUT,), jnp.float32),
    }

    fwd = jax.jit(lambda x: last_level_p6p7_forward(x, params))
    p6, p7 = jax.block_until_ready(fwd(c5))

    assert p6.shape == (N, COUT, H // 2, W // 2), p6.shape
    assert p7.shape == (N, COUT, H // 4, W // 4), p7.shape
    assert p6.dtype == jnp.float32 and p7.dtype == jnp.float32
    assert bool(jnp.all(jnp.isfinite(p6))) and bool(jnp.all(jnp.isfinite(p7)))

    ref_p6, ref_p7 = _reference(c5, params)
    np.testing.assert_allclose(np.asarray(p6), np.asarray(ref_p6),
                               rtol=3e-2, atol=3e-2)
    np.testing.assert_allclose(np.asarray(p7), np.asarray(ref_p7),
                               rtol=3e-2, atol=3e-2)

    print("KERNEL_OK")
</pallas_src>

<mosaic_0001>
module attributes {stable_mosaic.version = 11 : i64} {
  func.func @_p6p7_kernel(%arg0: i32, %arg1: memref<32x128xf32, #tpu.memory_space<vmem>>, %arg2: memref<3x16x32xf32, #tpu.memory_space<vmem>>, %arg3: memref<3x128x256xf32, #tpu.memory_space<vmem>>, %arg4: memref<1x256xf32, #tpu.memory_space<vmem>>, %arg5: memref<3x8x16xf32, #tpu.memory_space<vmem>>, %arg6: memref<3x256x128xf32, #tpu.memory_space<vmem>>, %arg7: memref<1x128xf32, #tpu.memory_space<vmem>>, %arg8: memref<16x256xf32, #tpu.memory_space<vmem>>, %arg9: memref<8x128xf32, #tpu.memory_space<vmem>>) attributes {dimension_semantics = [#tpu.dimension_semantics<arbitrary>], iteration_bounds = array<i64: 1>, scalar_prefetch = 0 : i64, scratch_operands = 0 : i64, tpu.core_type = #tpu.core_type<tc>, window_params = [{pipeline_mode = #tpu.pipeline_mode<synchronous>, transform_indices = @transform_0, window_bounds = array<i64: 32, 128>}, {pipeline_mode = #tpu.pipeline_mode<synchronous>, transform_indices = @transform_1, window_bounds = array<i64: 3, 16, 32>}, {pipeline_mode = #tpu.pipeline_mode<synchronous>, transform_indices = @transform_2, window_bounds = array<i64: 3, 128, 256>}, {pipeline_mode = #tpu.pipeline_mode<synchronous>, transform_indices = @transform_3, window_bounds = array<i64: 1, 256>}, {pipeline_mode = #tpu.pipeline_mode<synchronous>, transform_indices = @transform_4, window_bounds = array<i64: 3, 8, 16>}, {pipeline_mode = #tpu.pipeline_mode<synchronous>, transform_indices = @transform_5, window_bounds = array<i64: 3, 256, 128>}, {pipeline_mode = #tpu.pipeline_mode<synchronous>, transform_indices = @transform_6, window_bounds = array<i64: 1, 128>}, {pipeline_mode = #tpu.pipeline_mode<synchronous>, transform_indices = @transform_7, window_bounds = array<i64: 16, 256>}, {pipeline_mode = #tpu.pipeline_mode<synchronous>, transform_indices = @transform_8, window_bounds = array<i64: 8, 128>}]} {
    %c0 = arith.constant 0 : index
    %c0_0 = arith.constant 0 : index
    %0 = vector.load %arg1[%c0, %c0_0] : memref<32x128xf32, #tpu.memory_space<vmem>>, vector<32x128xf32>
    %cst = arith.constant 0.000000e+00 : f32
    %1 = vector.broadcast %cst : f32 to vector<16x256xf32>
    %c0_1 = arith.constant 0 : index
    %c0_2 = arith.constant 0 : index
    %c0_3 = arith.constant 0 : index
    %2 = vector.load %arg2[%c0_1, %c0_2, %c0_3] : memref<3x16x32xf32, #tpu.memory_space<vmem>>, vector<1x16x32xf32>
    %3 = vector.shape_cast %2 : vector<1x16x32xf32> to vector<16x32xf32>
    %cst_4 = arith.constant dense<0.000000e+00> : vector<16x128xf32>
    %4 = tpu.matmul %3, %0, %cst_4 {dimension_numbers = #tpu.dot_dimension_numbers<[1], [0], [0], [1], [0, 0, 1, 1], [], []>} : vector<16x32xf32>, vector<32x128xf32>, vector<16x128xf32> -> vector<16x128xf32>
    %c0_5 = arith.constant 0 : index
    %c0_6 = arith.constant 0 : index
    %c0_7 = arith.constant 0 : index
    %5 = vector.load %arg3[%c0_5, %c0_6, %c0_7] : memref<3x128x256xf32, #tpu.memory_space<vmem>>, vector<1x128x256xf32>
    %6 = vector.shape_cast %5 : vector<1x128x256xf32> to vector<128x256xf32>
    %cst_8 = arith.constant dense<0.000000e+00> : vector<16x256xf32>
    %7 = tpu.matmul %4, %6, %cst_8 {dimension_numbers = #tpu.dot_dimension_numbers<[1], [0], [0], [1], [0, 0, 1, 1], [], []>} : vector<16x128xf32>, vector<128x256xf32>, vector<16x256xf32> -> vector<16x256xf32>
    %8 = arith.addf %1, %7 : vector<16x256xf32>
    %c1 = arith.constant 1 : index
    %c0_9 = arith.constant 0 : index
    %c0_10 = arith.constant 0 : index
    %9 = vector.load %arg2[%c1, %c0_9, %c0_10] : memref<3x16x32xf32, #tpu.memory_space<vmem>>, vector<1x16x32xf32>
    %10 = vector.shape_cast %9 : vector<1x16x32xf32> to vector<16x32xf32>
    %cst_11 = arith.constant dense<0.000000e+00> : vector<16x128xf32>
    %11 = tpu.matmul %10, %0, %cst_11 {dimension_numbers = #tpu.dot_dimension_numbers<[1], [0], [0], [1], [0, 0, 1, 1], [], []>} : vector<16x32xf32>, vector<32x128xf32>, vector<16x128xf32> -> vector<16x128xf32>
    %c1_12 = arith.constant 1 : index
    %c0_13 = arith.constant 0 : index
    %c0_14 = arith.constant 0 : index
    %12 = vector.load %arg3[%c1_12, %c0_13, %c0_14] : memref<3x128x256xf32, #tpu.memory_space<vmem>>, vector<1x128x256xf32>
    %13 = vector.shape_cast %12 : vector<1x128x256xf32> to vector<128x256xf32>
    %cst_15 = arith.constant dense<0.000000e+00> : vector<16x256xf32>
    %14 = tpu.matmul %11, %13, %cst_15 {dimension_numbers = #tpu.dot_dimension_numbers<[1], [0], [0], [1], [0, 0, 1, 1], [], []>} : vector<16x128xf32>, vector<128x256xf32>, vector<16x256xf32> -> vector<16x256xf32>
    %15 = arith.addf %8, %14 : vector<16x256xf32>
    %c2 = arith.constant 2 : index
    %c0_16 = arith.constant 0 : index
    %c0_17 = arith.constant 0 : index
    %16 = vector.load %arg2[%c2, %c0_16, %c0_17] : memref<3x16x32xf32, #tpu.memory_space<vmem>>, vector<1x16x32xf32>
    %17 = vector.shape_cast %16 : vector<1x16x32xf32> to vector<16x32xf32>
    %cst_18 = arith.constant dense<0.000000e+00> : vector<16x128xf32>
    %18 = tpu.matmul %17, %0, %cst_18 {dimension_numbers = #tpu.dot_dimension_numbers<[1], [0], [0], [1], [0, 0, 1, 1], [], []>} : vector<16x32xf32>, vector<32x128xf32>, vector<16x128xf32> -> vector<16x128xf32>
    %c2_19 = arith.constant 2 : index
    %c0_20 = arith.constant 0 : index
    %c0_21 = arith.constant 0 : index
    %19 = vector.load %arg3[%c2_19, %c0_20, %c0_21] : memref<3x128x256xf32, #tpu.memory_space<vmem>>, vector<1x128x256xf32>
    %20 = vector.shape_cast %19 : vector<1x128x256xf32> to vector<128x256xf32>
    %cst_22 = arith.constant dense<0.000000e+00> : vector<16x256xf32>
    %21 = tpu.matmul %18, %20, %cst_22 {dimension_numbers = #tpu.dot_dimension_numbers<[1], [0], [0], [1], [0, 0, 1, 1], [], []>} : vector<16x128xf32>, vector<128x256xf32>, vector<16x256xf32> -> vector<16x256xf32>
    %22 = arith.addf %15, %21 : vector<16x256xf32>
    %c0_23 = arith.constant 0 : index
    %c0_24 = arith.constant 0 : index
    %23 = vector.load %arg4[%c0_23, %c0_24] : memref<1x256xf32, #tpu.memory_space<vmem>>, vector<1x256xf32>
    %24 = vector.broadcast %23 : vector<1x256xf32> to vector<16x256xf32>
    %25 = arith.addf %22, %24 : vector<16x256xf32>
    %c0_25 = arith.constant 0 : index
    %c0_26 = arith.constant 0 : index
    %26 = vector.load %arg8[%c0_25, %c0_26] : memref<16x256xf32, #tpu.memory_space<vmem>>, vector<16x256xf32>
    tpu.vector_store %arg8[%c0_25, %c0_26], %25 {strides = array<i32>} : memref<16x256xf32, #tpu.memory_space<vmem>>, vector<16x256xf32>,
    %cst_27 = arith.constant 0.000000e+00 : f32
    %27 = vector.broadcast %cst_27 : f32 to vector<16x256xf32>
    %28 = arith.maximumf %25, %27 : vector<16x256xf32>
    %cst_28 = arith.constant 0.000000e+00 : f32
    %29 = vector.broadcast %cst_28 : f32 to vector<8x128xf32>
    %c0_29 = arith.constant 0 : index
    %c0_30 = arith.constant 0 : index
    %c0_31 = arith.constant 0 : index
    %30 = vector.load %arg5[%c0_29, %c0_30, %c0_31] : memref<3x8x16xf32, #tpu.memory_space<vmem>>, vector<1x8x16xf32>
    %31 = vector.shape_cast %30 : vector<1x8x16xf32> to vector<8x16xf32>
    %cst_32 = arith.constant dense<0.000000e+00> : vector<8x256xf32>
    %32 = tpu.matmul %31, %28, %cst_32 {dimension_numbers = #tpu.dot_dimension_numbers<[1], [0], [0], [1], [0, 0, 1, 1], [], []>} : vector<8x16xf32>, vector<16x256xf32>, vector<8x256xf32> -> vector<8x256xf32>
    %c0_33 = arith.constant 0 : index
    %c0_34 = arith.constant 0 : index
    %c0_35 = arith.constant 0 : index
    %33 = vector.load %arg6[%c0_33, %c0_34, %c0_35] : memref<3x256x128xf32, #tpu.memory_space<vmem>>, vector<1x256x128xf32>
    %34 = vector.shape_cast %33 : vector<1x256x128xf32> to vector<256x128xf32>
    %cst_36 = arith.constant dense<0.000000e+00> : vector<8x128xf32>
    %35 = tpu.matmul %32, %34, %cst_36 {dimension_numbers = #tpu.dot_dimension_numbers<[1], [0], [0], [1], [0, 0, 1, 1], [], []>} : vector<8x256xf32>, vector<256x128xf32>, vector<8x128xf32> -> vector<8x128xf32>
    %36 = arith.addf %29, %35 : vector<8x128xf32>
    %c1_37 = arith.constant 1 : index
    %c0_38 = arith.constant 0 : index
    %c0_39 = arith.constant 0 : index
    %37 = vector.load %arg5[%c1_37, %c0_38, %c0_39] : memref<3x8x16xf32, #tpu.memory_space<vmem>>, vector<1x8x16xf32>
    %38 = vector.shape_cast %37 : vector<1x8x16xf32> to vector<8x16xf32>
    %cst_40 = arith.constant dense<0.000000e+00> : vector<8x256xf32>
    %39 = tpu.matmul %38, %28, %cst_40 {dimension_numbers = #tpu.dot_dimension_numbers<[1], [0], [0], [1], [0, 0, 1, 1], [], []>} : vector<8x16xf32>, vector<16x256xf32>, vector<8x256xf32> -> vector<8x256xf32>
    %c1_41 = arith.constant 1 : index
    %c0_42 = arith.constant 0 : index
    %c0_43 = arith.constant 0 : index
    %40 = vector.load %arg6[%c1_41, %c0_42, %c0_43] : memref<3x256x128xf32, #tpu.memory_space<vmem>>, vector<1x256x128xf32>
    %41 = vector.shape_cast %40 : vector<1x256x128xf32> to vector<256x128xf32>
    %cst_44 = arith.constant dense<0.000000e+00> : vector<8x128xf32>
    %42 = tpu.matmul %39, %41, %cst_44 {dimension_numbers = #tpu.dot_dimension_numbers<[1], [0], [0], [1], [0, 0, 1, 1], [], []>} : vector<8x256xf32>, vector<256x128xf32>, vector<8x128xf32> -> vector<8x128xf32>
    %43 = arith.addf %36, %42 : vector<8x128xf32>
    %c2_45 = arith.constant 2 : index
    %c0_46 = arith.constant 0 : index
    %c0_47 = arith.constant 0 : index
    %44 = vector.load %arg5[%c2_45, %c0_46, %c0_47] : memref<3x8x16xf32, #tpu.memory_space<vmem>>, vector<1x8x16xf32>
    %45 = vector.shape_cast %44 : vector<1x8x16xf32> to vector<8x16xf32>
    %cst_48 = arith.constant dense<0.000000e+00> : vector<8x256xf32>
    %46 = tpu.matmul %45, %28, %cst_48 {dimension_numbers = #tpu.dot_dimension_numbers<[1], [0], [0], [1], [0, 0, 1, 1], [], []>} : vector<8x16xf32>, vector<16x256xf32>, vector<8x256xf32> -> vector<8x256xf32>
    %c2_49 = arith.constant 2 : index
    %c0_50 = arith.constant 0 : index
    %c0_51 = arith.constant 0 : index
    %47 = vector.load %arg6[%c2_49, %c0_50, %c0_51] : memref<3x256x128xf32, #tpu.memory_space<vmem>>, vector<1x256x128xf32>
    %48 = vector.shape_cast %47 : vector<1x256x128xf32> to vector<256x128xf32>
    %cst_52 = arith.constant dense<0.000000e+00> : vector<8x128xf32>
    %49 = tpu.matmul %46, %48, %cst_52 {dimension_numbers = #tpu.dot_dimension_numbers<[1], [0], [0], [1], [0, 0, 1, 1], [], []>} : vector<8x256xf32>, vector<256x128xf32>, vector<8x128xf32> -> vector<8x128xf32>
    %50 = arith.addf %43, %49 : vector<8x128xf32>
    %c0_53 = arith.constant 0 : index
    %c0_54 = arith.constant 0 : index
    %51 = vector.load %arg7[%c0_53, %c0_54] : memref<1x128xf32, #tpu.memory_space<vmem>>, vector<1x128xf32>
    %52 = vector.broadcast %51 : vector<1x128xf32> to vector<8x128xf32>
    %53 = arith.addf %50, %52 : vector<8x128xf32>
    %c0_55 = arith.constant 0 : index
    %c0_56 = arith.constant 0 : index
    %54 = vector.load %arg9[%c0_55, %c0_56] : memref<8x128xf32, #tpu.memory_space<vmem>>, vector<8x128xf32>
    tpu.vector_store %arg9[%c0_55, %c0_56], %53 {strides = array<i32>} : memref<8x128xf32, #tpu.memory_space<vmem>>, vector<8x128xf32>,
    return
  }
  func.func @transform_0(%arg0: i32) -> (i32, i32) {
    %c0_i32 = arith.constant 0 : i32
    %c0_i32_0 = arith.constant 0 : i32
    %c0_i32_1 = arith.constant 0 : i32
    return %c0_i32, %c0_i32_0 : i32, i32
  }
  func.func @transform_1(%arg0: i32) -> (i32, i32, i32) {
    %c0_i32 = arith.constant 0 : i32
    %c0_i32_0 = arith.constant 0 : i32
    %c0_i32_1 = arith.constant 0 : i32
    %c0_i32_2 = arith.constant 0 : i32
    return %c0_i32, %c0_i32_0, %c0_i32_1 : i32, i32, i32
  }
  func.func @transform_2(%arg0: i32) -> (i32, i32, i32) {
    %c0_i32 = arith.constant 0 : i32
    %c0_i32_0 = arith.constant 0 : i32
    %c0_i32_1 = arith.constant 0 : i32
    %c0_i32_2 = arith.constant 0 : i32
    return %c0_i32, %c0_i32_0, %c0_i32_1 : i32, i32, i32
  }
  func.func @transform_3(%arg0: i32) -> (i32, i32) {
    %c0_i32 = arith.constant 0 : i32
    %c0_i32_0 = arith.constant 0 : i32
    %c0_i32_1 = arith.constant 0 : i32
    return %c0_i32, %c0_i32_0 : i32, i32
  }
  func.func @transform_4(%arg0: i32) -> (i32, i32, i32) {
    %c0_i32 = arith.constant 0 : i32
    %c0_i32_0 = arith.constant 0 : i32
    %c0_i32_1 = arith.constant 0 : i32
    %c0_i32_2 = arith.constant 0 : i32
    return %c0_i32, %c0_i32_0, %c0_i32_1 : i32, i32, i32
  }
  func.func @transform_5(%arg0: i32) -> (i32, i32, i32) {
    %c0_i32 = arith.constant 0 : i32
    %c0_i32_0 = arith.constant 0 : i32
    %c0_i32_1 = arith.constant 0 : i32
    %c0_i32_2 = arith.constant 0 : i32
    return %c0_i32, %c0_i32_0, %c0_i32_1 : i32, i32, i32
  }
  func.func @transform_6(%arg0: i32) -> (i32, i32) {
    %c0_i32 = arith.constant 0 : i32
    %c0_i32_0 = arith.constant 0 : i32
    %c0_i32_1 = arith.constant 0 : i32
    return %c0_i32, %c0_i32_0 : i32, i32
  }
  func.func @transform_7(%arg0: i32) -> (i32, i32) {
    %c0_i32 = arith.constant 0 : i32
    %c0_i32_0 = arith.constant 0 : i32
    %c0_i32_1 = arith.constant 0 : i32
    return %c0_i32, %c0_i32_0 : i32, i32
  }
  func.func @transform_8(%arg0: i32) -> (i32, i32) {
    %c0_i32 = arith.constant 0 : i32
    %c0_i32_0 = arith.constant 0 : i32
    %c0_i32_1 = arith.constant 0 : i32
    return %c0_i32, %c0_i32_0 : i32, i32
  }
}

</mosaic_0001>

<llo_original>
// kernel: tile.10
$region0: #{tile.10}
  #allocation0 [shape = 's32[1]{0}', space=sflag, size = 0x4, scoped, tag = 'scoped memory for tile.10']
  %s0 = inlined_call_operand.vmem [shape: f32[32], index: 0, kind: input, shape index: {}]
  %s1 = inlined_call_operand.vmem [shape: f32[8,32], index: 1, kind: output, shape index: {}]
  // Predicated region
  $region2: #{tile.10} parent=0 // pred_check
    _
  $region3: #{tile.10} parent=0 // pred_check_branch
    %3 = sbr.rel (0) target = $region5
  $region4: #{tile.10} parent=0 // pred_region
    _
  $region5: #{tile.10} parent=0 // pred_fallthru
    _
  %v4 = vld [vmem:[%s0] ss:$0 sm:$0xff]
  %5 = vst [vmem:[%s1] sm:$0xff] %v4

// kernel: tile.11
$region0: #{tile.11}
  %s0 = inlined_call_operand.vmem [shape: f32[8,32], index: 0, kind: input, shape index: {}]
  %s1 = inlined_call_operand.vmem [shape: f32[1,256], index: 1, kind: output, shape index: {}]
  $region1: #{tile.11} parent=0
    #allocation0 [shape = 'u8[8192]{0}', space=vmem, size = 0x2000, scoped, tag = 'scoped mem for output reshape']
    %s2 = smov 3
    %v3 = vld [vmem:[%s0] ss:$4 sm:%s2]
    %vm4 = vcmask 261120
    %5 = vst.msk [vmem:[#allocation0] ss:$8 sm:$0x3] %vm4, %v3
    %s6 = scalar_lea.vmem %s0, 3
    %s7 = smov 3
    %v8 = vld [vmem:[%s6] ss:$4 sm:%s7]
    %9 = vrot.lane.b32.xlu0 %v8, 96
    %v10 = vpop.permute.xlu0 %9
    %vm11 = vcmask 1048320
    %12 = vst.msk [vmem:[#allocation0] ss:$8 sm:$0x3] %vm11, %v10
    %s13 = scalar_lea.vmem %s0, 2
    %s14 = smov 3
    %v15 = vld [vmem:[%s13] ss:$4 sm:%s14]
    %16 = vrot.lane.b32.xlu0 %v15, 64
    %v17 = vpop.permute.xlu0 %16
    %vm18 = vcmask 785920
    %19 = vst.msk [vmem:[#allocation0] ss:$8 sm:$0x3] %vm18, %v17
    %s20 = scalar_lea.vmem %s0, 1
    %s21 = smov 3
    %v22 = vld [vmem:[%s20] ss:$4 sm:%s21]
    %23 = vrot.lane.b32.xlu0 %v22, 32
    %v24 = vpop.permute.xlu0 %23
    %vm25 = vcmask 523520
    %26 = vst.msk [vmem:[#allocation0] ss:$8 sm:$0x3] %vm25, %v24
    %s28 = sshllo.u32 0, 1
    %v30 = vld [vmem:[#allocation0] sm:%s28]
    %s31 = sshllo.u32 0, 1
    %32 = vst [vmem:[%s1] sm:%s31] %v30
    %s33 = scalar_lea.vmem [#allocation0], 8
    %v34 = vld [vmem:[%s33] sm:%s28]
    %s35 = sshllo.u32 0, 1
    %s36 = scalar_lea.vmem %s1, 1
    %37 = vst [vmem:[%s36] sm:%s35] %v34

// kernel: tile.14
$region0: #{tile.14}
  #allocation0 [shape = 's32[1]{0}', space=sflag, size = 0x4, scoped, tag = 'scoped memory for tile.14']
  %s0 = inlined_call_operand.vmem [shape: f32[32], index: 0, kind: input, shape index: {}]
  %s1 = inlined_call_operand.vmem [shape: f32[4,32], index: 1, kind: output, shape index: {}]
  // Predicated region
  $region2: #{tile.14} parent=0 // pred_check
    _
  $region3: #{tile.14} parent=0 // pred_check_branch
    %3 = sbr.rel (0) target = $region5
  $region4: #{tile.14} parent=0 // pred_region
    _
  $region5: #{tile.14} parent=0 // pred_fallthru
    _
  %v4 = vld [vmem:[%s0] ss:$0 sm:$0xff]
  %5 = vst [vmem:[%s1] sm:$0xf] %v4

// kernel: tile.15
$region0: #{tile.15}
  %s0 = inlined_call_operand.vmem [shape: f32[4,32], index: 0, kind: input, shape index: {}]
  %s1 = inlined_call_operand.vmem [shape: f32[1,128], index: 1, kind: output, shape index: {}]
  $region1: #{tile.15} parent=0
    #allocation0 [shape = 'u8[4096]{0}', space=vmem, size = 0x1000, scoped, tag = 'scoped mem for output reshape']
    #allocation1 [shape = 'u8[4096]{0}', space=vmem, size = 0x1000, scoped, tag = 'scoped mem for input reshape']
    %s3 = sshllo.u32 0, 4
    %v4 = vld [vmem:[%s0] sm:%s3]
    %5 = vst [vmem:[#allocation1] sm:%s3] %v4
    %v6 = vld [vmem:[#allocation1] sm:$0x1]
    %vm7 = vcmask 261120
    %8 = vst.msk [vmem:[#allocation0] sm:$0x1] %vm7, %v6
    %s9 = scalar_lea.vmem [#allocation1], 3
    %v10 = vld [vmem:[%s9] sm:$0x1]
    %11 = vrot.lane.b32.xlu0 %v10, 96
    %v12 = vpop.permute.xlu0 %11
    %vm13 = vcmask 1048320
    %14 = vst.msk [vmem:[#allocation0] sm:$0x1] %vm13, %v12
    %s15 = scalar_lea.vmem [#allocation1], 2
    %v16 = vld [vmem:[%s15] sm:$0x1]
    %17 = vrot.lane.b32.xlu0 %v16, 64
    %v18 = vpop.permute.xlu0 %17
    %vm19 = vcmask 785920
    %20 = vst.msk [vmem:[#allocation0] sm:$0x1] %vm19, %v18
    %s21 = scalar_lea.vmem [#allocation1], 1
    %v22 = vld [vmem:[%s21] sm:$0x1]
    %23 = vrot.lane.b32.xlu0 %v22, 32
    %v24 = vpop.permute.xlu0 %23
    %vm25 = vcmask 523520
    %26 = vst.msk [vmem:[#allocation0] sm:$0x1] %vm25, %v24
    %s28 = sshllo.u32 0, 1
    %v30 = vld [vmem:[#allocation0] sm:%s28]
    %s31 = sshllo.u32 0, 1
    %32 = vst [vmem:[%s1] sm:%s31] %v30

// kernel: _lambda_.1
$region0: #{_lambda_.1}
  #allocation0 [shape = 'u32[]', space=smem, size = 0x4, offset = 0x4, fixed_abs, tag = 'smem constant byte address 0x4 - core index']
  #allocation1 [shape = 'u32[144,128]{1,0:T(1,128)}', space=vmem, size = 0x12000, scoped, tag = 'internal scratch']
  %s0 = inlined_call_operand.vmem [shape: f32[32,128], index: 0, kind: input, shape index: {}]
  %s1 = inlined_call_operand.vmem [shape: f32[3,16,32], index: 1, kind: input, shape index: {}]
  %s2 = inlined_call_operand.vmem [shape: f32[3,128,256], index: 2, kind: input, shape index: {}]
  %s3 = inlined_call_operand.vmem [shape: f32[1,256], index: 3, kind: input, shape index: {}]
  %s4 = inlined_call_operand.vmem [shape: f32[3,8,16], index: 4, kind: input, shape index: {}]
  %s5 = inlined_call_operand.hbm [shape: f32[3,256,128], index: 5, kind: input, shape index: {}]
  %s6 = inlined_call_operand.vmem [shape: f32[1,128], index: 6, kind: input, shape index: {}]
  %s7 = inlined_call_operand.vmem [shape: f32[16,256], index: 7, kind: output, shape index: {0}]
  %s8 = inlined_call_operand.vmem [shape: f32[8,128], index: 8, kind: output, shape index: {1}]
  %9 = xla_tuple %s7, %s8
  %s10 = sld [smem:[#allocation0]]
  $region50: #{_lambda_.1} parent=0
    _
  %s12 = ssub.s32 1, %s10
  %s13 = scalar_select 0, %s12, %s10
  $region1: #{_lambda_.1} parent=0
    #allocation2 [shape = 'u8[393216]{0}', space=vmem, size = 0x60000, scoped, tag = 'input window, operand 5, single buffered']
    #allocation3 [shape = 's32[1]{0}', space=sflag, size = 0x4, scoped, tag = 'scoped memory for _lambda_.1']
    %14 = vsyncpa [#allocation3], 0
    // Predicated region
    $region2: #{_lambda_.1} parent=1 // pred_check
      _
    $region3: #{_lambda_.1} parent=1 // pred_check_branch
      %16 = sbr.rel (0) target = $region5
    $region4: #{_lambda_.1} parent=1 // pred_region
      _
    $region5: #{_lambda_.1} parent=1 // pred_fallthru
      _
    // Predicated region
    $region6: #{_lambda_.1} parent=1 // pred_check
      _
    $region7: #{_lambda_.1} parent=1 // pred_check_branch
      %18 = sbr.rel (0) target = $region9
    $region8: #{_lambda_.1} parent=1 // pred_region
      _
    $region9: #{_lambda_.1} parent=1 // pred_fallthru
      _
    // Predicated region
    $region10: #{_lambda_.1} parent=1 // pred_check
      _
    $region11: #{_lambda_.1} parent=1 // pred_check_branch
      %20 = sbr.rel (0) target = $region13
    $region12: #{_lambda_.1} parent=1 // pred_region
      _
    $region13: #{_lambda_.1} parent=1 // pred_fallthru
      _
    // Predicated region
    $region14: #{_lambda_.1} parent=1 // pred_check
      _
    $region15: #{_lambda_.1} parent=1 // pred_check_branch
      %22 = sbr.rel (0) target = $region17
    $region16: #{_lambda_.1} parent=1 // pred_region
      _
    $region17: #{_lambda_.1} parent=1 // pred_fallthru
      _
    // Predicated region
    $region18: #{_lambda_.1} parent=1 // pred_check
      _
    $region19: #{_lambda_.1} parent=1 // pred_check_branch
      %24 = sbr.rel (0) target = $region21
    $region20: #{_lambda_.1} parent=1 // pred_region
      _
    $region21: #{_lambda_.1} parent=1 // pred_fallthru
      _
    // Predicated region
    $region22: #{_lambda_.1} parent=1 // pred_check
      _
    $region23: #{_lambda_.1} parent=1 // pred_check_branch
      %26 = sbr.rel (0) target = $region25
    $region24: #{_lambda_.1} parent=1 // pred_region
      %s28 = ssub.s32 12288, 12288
      %29 = vsyncadd [#allocation3], %s28
      %s30 = sshll.u32 [#allocation2], 4
      %s31 = int_to_ptr.vmem [resolvable:$true] %s30
      %36 = dma.hbm_to_vmem [thread:$0]  %s5, 12288, %s31, [#allocation3], 128, 128, 8
    $region25: #{_lambda_.1} parent=1 // pred_fallthru
      _
    // Predicated region
    $region26: #{_lambda_.1} parent=1 // pred_check
      _
    $region27: #{_lambda_.1} parent=1 // pred_check_branch
      %38 = sbr.rel (0) target = $region29
    $region28: #{_lambda_.1} parent=1 // pred_region
      _
    $region29: #{_lambda_.1} parent=1 // pred_fallthru
      _
    // Predicated region
    $region30: #{_lambda_.1} parent=1 // pred_check
      _
    $region31: #{_lambda_.1} parent=1 // pred_check_branch
      %40 = sbr.rel (0) target = $region33
    $region32: #{_lambda_.1} parent=1 // pred_region
      %41 = dma.done [#allocation3], 12288
    $region33: #{_lambda_.1} parent=1 // pred_fallthru
      _
    %v42 = vld [vmem:[%s0] sm:$0xff]
    %v43 = vld [vmem:[%s0 + $0x8] sm:$0xff]
    %v44 = vld [vmem:[%s0 + $0x10] sm:$0xff]
    %v45 = vld [vmem:[%s0 + $0x18] sm:$0xff]
    %v46 = vld [vmem:[%s1] sm:$0xff]
    %v47 = vld [vmem:[%s1 + $0x8] sm:$0xff]
    %vm48 = vcmask 261120
    %v50 = vsel %vm48, %v46, 0
    %v53 = vsel %vm48, %v47, 0
    %55 = vmatprep.subr.mxu0 0.0
    %56 = vmatpush1.msra.mxu0 %v42
    %57 = vmatprep.subr.mxu0 0.0
    %58 = vmatpush1.msra.mxu0 %v43
    %59 = vmatprep.subr.mxu0 0.0
    %60 = vmatpush1.msra.mxu0 %v44
    %61 = vmatprep.subr.mxu0 0.0
    %62 = vmatpush1.msra.mxu0 %v45
    %63 = vmatprep.subr.mxu0 0.0
    %64 = vmatpush1.msra.mxu0 0.0
    %65 = vmatprep.subr.mxu0 0.0
    %66 = vmatpush1.msra.mxu0 0.0
    %67 = vmatprep.subr.mxu0 0.0
    %68 = vmatpush1.msra.mxu0 0.0
    %69 = vmatprep.subr.mxu0 0.0
    %70 = vmatpush1.msra.mxu0 0.0
    %71 = vmatprep.subr.mxu0 0.0
    %72 = vmatpush1.msra.mxu0 0.0
    %73 = vmatprep.subr.mxu0 0.0
    %74 = vmatpush1.msra.mxu0 0.0
    %75 = vmatprep.subr.mxu0 0.0
    %76 = vmatpush1.msra.mxu0 0.0
    %77 = vmatprep.subr.mxu0 0.0
    %78 = vmatpush1.msra.mxu0 0.0
    %79 = vmatprep.subr.mxu0 0.0
    %80 = vmatpush1.msra.mxu0 0.0
    %81 = vmatprep.subr.mxu0 0.0
    %82 = vmatpush1.msra.mxu0 0.0
    %83 = vmatprep.subr.mxu0 0.0
    %84 = vmatpush1.msra.mxu0 0.0
    %85 = vmatprep.subr.mxu0 0.0
    %86 = vmatpush1.msra.mxu0 0.0
    %87 = vmatprep.subr.mxu0 0.0
    %88 = vmatpush1.msra.mxu0 0.0
    %89 = vmatprep.subr.mxu0 0.0
    %90 = vmatpush1.msra.mxu0 0.0
    %91 = vmatprep.subr.mxu0 0.0
    %92 = vmatpush1.msra.mxu0 0.0
    %93 = vmatprep.subr.mxu0 0.0
    %94 = vmatpush1.msra.mxu0 0.0
    %95 = vmatprep.subr.mxu0 0.0
    %96 = vmatpush1.msra.mxu0 0.0
    %97 = vmatprep.subr.mxu0 0.0
    %98 = vmatpush1.msra.mxu0 0.0
    %99 = vmatprep.subr.mxu0 0.0
    %100 = vmatpush1.msra.mxu0 0.0
    %101 = vmatprep.subr.mxu0 0.0
    %102 = vmatpush1.msra.mxu0 0.0
    %103 = vmatprep.subr.mxu0 0.0
    %104 = vmatpush1.msra.mxu0 0.0
    %105 = vmatprep.subr.mxu0 0.0
    %106 = vmatpush1.msra.mxu0 0.0
    %107 = vmatprep.subr.mxu0 0.0
    %108 = vmatpush1.msra.mxu0 0.0
    %109 = vmatprep.subr.mxu0 0.0
    %110 = vmatpush1.msra.mxu0 0.0
    %111 = vmatprep.subr.mxu0 0.0
    %112 = vmatpush1.msra.mxu0 0.0
    %113 = vmatprep.subr.mxu0 0.0
    %114 = vmatpush1.msra.mxu0 0.0
    %115 = vmatprep.subr.mxu0 0.0
    %116 = vmatpush1.msra.mxu0 0.0
    %117 = vmatprep.subr.mxu0 0.0
    %118 = vmatpush1.msra.mxu0 0.0
    %119 = vmatprep.mubr.f32.mxu0 0.0
    %120 = vmatmul.mubr.f32.gmra.mrb[0].mxu0 %v50
    %v121 = vpop.f32.mrb[0].mxu0
    %v122 = vadd.f32 0.0, %v121
    %v123 = vpop.f32.mrb[0].mxu0
    %124 = vmatprep.mubr.f32.mxu0 0.0
    %125 = vmatmul.mubr.f32.gmra.mrb[0].mxu0 %v53
    %v126 = vpop.f32.mrb[0].mxu0
    %v127 = vadd.f32 0.0, %v126
    %v128 = vpop.f32.mrb[0].mxu0
    %129 = vdwg.mxu0
    %v130 = vld [vmem:[%s2] sm:$0xff]
    %v131 = vld [vmem:[%s2 + $0x8] sm:$0xff]
    %v132 = vld [vmem:[%s2 + $0x10] sm:$0xff]
    %v133 = vld [vmem:[%s2 + $0x18] sm:$0xff]
    %v134 = vld [vmem:[%s2 + $0x20] sm:$0xff]
    %v135 = vld [vmem:[%s2 + $0x28] sm:$0xff]
    %v136 = vld [vmem:[%s2 + $0x30] sm:$0xff]
    %v137 = vld [vmem:[%s2 + $0x38] sm:$0xff]
    %v138 = vld [vmem:[%s2 + $0x40] sm:$0xff]
    %v139 = vld [vmem:[%s2 + $0x48] sm:$0xff]
    %v140 = vld [vmem:[%s2 + $0x50] sm:$0xff]
    %v141 = vld [vmem:[%s2 + $0x58] sm:$0xff]
    %v142 = vld [vmem:[%s2 + $0x60] sm:$0xff]
    %v143 = vld [vmem:[%s2 + $0x68] sm:$0xff]
    %v144 = vld [vmem:[%s2 + $0x70] sm:$0xff]
    %v145 = vld [vmem:[%s2 + $0x78] sm:$0xff]
    %v146 = vld [vmem:[%s2 + $0x80] sm:$0xff]
    %v147 = vld [vmem:[%s2 + $0x88] sm:$0xff]
    %v148 = vld [vmem:[%s2 + $0x90] sm:$0xff]
    %v149 = vld [vmem:[%s2 + $0x98] sm:$0xff]
    %v150 = vld [vmem:[%s2 + $0xa0] sm:$0xff]
    %v151 = vld [vmem:[%s2 + $0xa8] sm:$0xff]
    %v152 = vld [vmem:[%s2 + $0xb0] sm:$0xff]
    %v153 = vld [vmem:[%s2 + $0xb8] sm:$0xff]
    %v154 = vld [vmem:[%s2 + $0xc0] sm:$0xff]
    %v155 = vld [vmem:[%s2 + $0xc8] sm:$0xff]
    %v156 = vld [vmem:[%s2 + $0xd0] sm:$0xff]
    %v157 = vld [vmem:[%s2 + $0xd8] sm:$0xff]
    %v158 = vld [vmem:[%s2 + $0xe0] sm:$0xff]
    %v159 = vld [vmem:[%s2 + $0xe8] sm:$0xff]
    %v160 = vld [vmem:[%s2 + $0xf0] sm:$0xff]
    %v161 = vld [vmem:[%s2 + $0xf8] sm:$0xff]
    %s162 = scalar_lea.vmem %s1, 16
    %v163 = vld [vmem:[%s162] sm:$0xff]
    %v164 = vld [vmem:[%s162 + $0x8] sm:$0xff]
    %v166 = vsel %vm48, %v163, 0
    %v169 = vsel %vm48, %v164, 0
    %171 = vmatprep.subr.mxu0 0.0
    %172 = vmatpush1.msra.mxu0 %v42
    %173 = vmatprep.subr.mxu0 0.0
    %174 = vmatpush1.msra.mxu0 %v43
    %175 = vmatprep.subr.mxu0 0.0
    %176 = vmatpush1.msra.mxu0 %v44
    %177 = vmatprep.subr.mxu0 0.0
    %178 = vmatpush1.msra.mxu0 %v45
    %179 = vmatprep.subr.mxu0 0.0
    %180 = vmatpush1.msra.mxu0 0.0
    %181 = vmatprep.subr.mxu0 0.0
    %182 = vmatpush1.msra.mxu0 0.0
    %183 = vmatprep.subr.mxu0 0.0
    %184 = vmatpush1.msra.mxu0 0.0
    %185 = vmatprep.subr.mxu0 0.0
    %186 = vmatpush1.msra.mxu0 0.0
    %187 = vmatprep.subr.mxu0 0.0
    %188 = vmatpush1.msra.mxu0 0.0
    %189 = vmatprep.subr.mxu0 0.0
    %190 = vmatpush1.msra.mxu0 0.0
    %191 = vmatprep.subr.mxu0 0.0
    %192 = vmatpush1.msra.mxu0 0.0
    %193 = vmatprep.subr.mxu0 0.0
    %194 = vmatpush1.msra.mxu0 0.0
    %195 = vmatprep.subr.mxu0 0.0
    %196 = vmatpush1.msra.mxu0 0.0
    %197 = vmatprep.subr.mxu0 0.0
    %198 = vmatpush1.msra.mxu0 0.0
    %199 = vmatprep.subr.mxu0 0.0
    %200 = vmatpush1.msra.mxu0 0.0
    %201 = vmatprep.subr.mxu0 0.0
    %202 = vmatpush1.msra.mxu0 0.0
    %203 = vmatprep.subr.mxu0 0.0
    %204 = vmatpush1.msra.mxu0 0.0
    %205 = vmatprep.subr.mxu0 0.0
    %206 = vmatpush1.msra.mxu0 0.0
    %207 = vmatprep.subr.mxu0 0.0
    %208 = vmatpush1.msra.mxu0 0.0
    %209 = vmatprep.subr.mxu0 0.0
    %210 = vmatpush1.msra.mxu0 0.0
    %211 = vmatprep.subr.mxu0 0.0
    %212 = vmatpush1.msra.mxu0 0.0
    %213 = vmatprep.subr.mxu0 0.0
    %214 = vmatpush1.msra.mxu0 0.0
    %215 = vmatprep.subr.mxu0 0.0
    %216 = vmatpush1.msra.mxu0 0.0
    %217 = vmatprep.subr.mxu0 0.0
    %218 = vmatpush1.msra.mxu0 0.0
    %219 = vmatprep.subr.mxu0 0.0
    %220 = vmatpush1.msra.mxu0 0.0
    %221 = vmatprep.subr.mxu0 0.0
    %222 = vmatpush1.msra.mxu0 0.0
    %223 = vmatprep.subr.mxu0 0.0
    %224 = vmatpush1.msra.mxu0 0.0
    %225 = vmatprep.subr.mxu0 0.0
    %226 = vmatpush1.msra.mxu0 0.0
    %227 = vmatprep.subr.mxu0 0.0
    %228 = vmatpush1.msra.mxu0 0.0
    %229 = vmatprep.subr.mxu0 0.0
    %230 = vmatpush1.msra.mxu0 0.0
    %231 = vmatprep.subr.mxu0 0.0
    %232 = vmatpush1.msra.mxu0 0.0
    %233 = vmatprep.subr.mxu0 0.0
    %234 = vmatpush1.msra.mxu0 0.0
    %235 = vmatprep.mubr.f32.mxu0 0.0
    %236 = vmatmul.mubr.f32.gmra.mrb[0].mxu0 %v166
    %v237 = vpop.f32.mrb[0].mxu0
    %v238 = vadd.f32 0.0, %v237
    %v239 = vpop.f32.mrb[0].mxu0
    %240 = vmatprep.mubr.f32.mxu0 0.0
    %241 = vmatmul.mubr.f32.gmra.mrb[0].mxu0 %v169
    %v242 = vpop.f32.mrb[0].mxu0
    %v243 = vadd.f32 0.0, %v242
    %v244 = vpop.f32.mrb[0].mxu0
    %245 = vdwg.mxu0
    %s246 = scalar_lea.vmem %s2, 256
    %v247 = vld [vmem:[%s246] sm:$0xff]
    %v248 = vld [vmem:[%s246 + $0x8] sm:$0xff]
    %v249 = vld [vmem:[%s246 + $0x10] sm:$0xff]
    %v250 = vld [vmem:[%s246 + $0x18] sm:$0xff]
    %v251 = vld [vmem:[%s246 + $0x20] sm:$0xff]
    %v252 = vld [vmem:[%s246 + $0x28] sm:$0xff]
    %v253 = vld [vmem:[%s246 + $0x30] sm:$0xff]
    %v254 = vld [vmem:[%s246 + $0x38] sm:$0xff]
    %v255 = vld [vmem:[%s246 + $0x40] sm:$0xff]
    %v256 = vld [vmem:[%s246 + $0x48] sm:$0xff]
    %v257 = vld [vmem:[%s246 + $0x50] sm:$0xff]
    %v258 = vld [vmem:[%s246 + $0x58] sm:$0xff]
    %v259 = vld [vmem:[%s246 + $0x60] sm:$0xff]
    %v260 = vld [vmem:[%s246 + $0x68] sm:$0xff]
    %v261 = vld [vmem:[%s246 + $0x70] sm:$0xff]
    %v262 = vld [vmem:[%s246 + $0x78] sm:$0xff]
    %v263 = vld [vmem:[%s246 + $0x80] sm:$0xff]
    %v264 = vld [vmem:[%s246 + $0x88] sm:$0xff]
    %v265 = vld [vmem:[%s246 + $0x90] sm:$0xff]
    %v266 = vld [vmem:[%s246 + $0x98] sm:$0xff]
    %v267 = vld [vmem:[%s246 + $0xa0] sm:$0xff]
    %v268 = vld [vmem:[%s246 + $0xa8] sm:$0xff]
    %v269 = vld [vmem:[%s246 + $0xb0] sm:$0xff]
    %v270 = vld [vmem:[%s246 + $0xb8] sm:$0xff]
    %v271 = vld [vmem:[%s246 + $0xc0] sm:$0xff]
    %v272 = vld [vmem:[%s246 + $0xc8] sm:$0xff]
    %v273 = vld [vmem:[%s246 + $0xd0] sm:$0xff]
    %v274 = vld [vmem:[%s246 + $0xd8] sm:$0xff]
    %v275 = vld [vmem:[%s246 + $0xe0] sm:$0xff]
    %v276 = vld [vmem:[%s246 + $0xe8] sm:$0xff]
    %v277 = vld [vmem:[%s246 + $0xf0] sm:$0xff]
    %v278 = vld [vmem:[%s246 + $0xf8] sm:$0xff]
    %279 = vmatprep.subr.mxu0 %v248
    %280 = vmatpush1.msra.mxu0 %v247
    %281 = vmatprep.subr.mxu0 %v250
    %282 = vmatpush1.msra.mxu0 %v249
    %283 = vmatprep.subr.mxu0 %v252
    %284 = vmatpush1.msra.mxu0 %v251
    %285 = vmatprep.subr.mxu0 %v254
    %286 = vmatpush1.msra.mxu0 %v253
    %287 = vmatprep.subr.mxu0 %v256
    %288 = vmatpush1.msra.mxu0 %v255
    %289 = vmatprep.subr.mxu0 %v258
    %290 = vmatpush1.msra.mxu0 %v257
    %291 = vmatprep.subr.mxu0 %v260
    %292 = vmatpush1.msra.mxu0 %v259
    %293 = vmatprep.subr.mxu0 %v262
    %294 = vmatpush1.msra.mxu0 %v261
    %295 = vmatprep.subr.mxu0 %v264
    %296 = vmatpush1.msra.mxu0 %v263
    %297 = vmatprep.subr.mxu0 %v266
    %298 = vmatpush1.msra.mxu0 %v265
    %299 = vmatprep.subr.mxu0 %v268
    %300 = vmatpush1.msra.mxu0 %v267
    %301 = vmatprep.subr.mxu0 %v270
    %302 = vmatpush1.msra.mxu0 %v269
    %303 = vmatprep.subr.mxu0 %v272
    %304 = vmatpush1.msra.mxu0 %v271
    %305 = vmatprep.subr.mxu0 %v274
    %306 = vmatpush1.msra.mxu0 %v273
    %307 = vmatprep.subr.mxu0 %v276
    %308 = vmatpush1.msra.mxu0 %v275
    %309 = vmatprep.subr.mxu0 %v278
    %310 = vmatpush1.msra.mxu0 %v277
    %311 = vmatprep.subr.mxu0 0.0
    %312 = vmatpush1.msra.mxu0 0.0
    %313 = vmatprep.subr.mxu0 0.0
    %314 = vmatpush1.msra.mxu0 0.0
    %315 = vmatprep.subr.mxu0 0.0
    %316 = vmatpush1.msra.mxu0 0.0
    %317 = vmatprep.subr.mxu0 0.0
    %318 = vmatpush1.msra.mxu0 0.0
    %319 = vmatprep.subr.mxu0 0.0
    %320 = vmatpush1.msra.mxu0 0.0
    %321 = vmatprep.subr.mxu0 0.0
    %322 = vmatpush1.msra.mxu0 0.0
    %323 = vmatprep.subr.mxu0 0.0
    %324 = vmatpush1.msra.mxu0 0.0
    %325 = vmatprep.subr.mxu0 0.0
    %326 = vmatpush1.msra.mxu0 0.0
    %327 = vmatprep.subr.mxu0 0.0
    %328 = vmatpush1.msra.mxu0 0.0
    %329 = vmatprep.subr.mxu0 0.0
    %330 = vmatpush1.msra.mxu0 0.0
    %331 = vmatprep.subr.mxu0 0.0
    %332 = vmatpush1.msra.mxu0 0.0
    %333 = vmatprep.subr.mxu0 0.0
    %334 = vmatpush1.msra.mxu0 0.0
    %335 = vmatprep.subr.mxu0 0.0
    %336 = vmatpush1.msra.mxu0 0.0
    %337 = vmatprep.subr.mxu0 0.0
    %338 = vmatpush1.msra.mxu0 0.0
    %339 = vmatprep.subr.mxu0 0.0
    %340 = vmatpush1.msra.mxu0 0.0
    %341 = vmatprep.subr.mxu0 0.0
    %342 = vmatpush1.msra.mxu0 0.0
    %343 = vmatprep.mubr.f32.mxu0 0.0
    %344 = vmatmul.mubr.f32.gmra.mrb[0].mxu0 %v238
    %v345 = vpop.f32.mrb[0].mxu0
    %v346 = vadd.f32 0.0, %v345
    %v347 = vpop.f32.mrb[0].mxu0
    %v348 = vadd.f32 0.0, %v347
    %349 = vmatprep.mubr.f32.mxu0 0.0
    %350 = vmatmul.mubr.f32.gmra.mrb[0].mxu0 %v243
    %v351 = vpop.f32.mrb[0].mxu0
    %v352 = vadd.f32 0.0, %v351
    %v353 = vpop.f32.mrb[0].mxu0
    %v354 = vadd.f32 0.0, %v353
    %355 = vdwg.mxu0
    %356 = vmatprep.subr.mxu0 %v131
    %357 = vmatpush1.msra.mxu0 %v130
    %358 = vmatprep.subr.mxu0 %v133
    %359 = vmatpush1.msra.mxu0 %v132
    %360 = vmatprep.subr.mxu0 %v135
    %361 = vmatpush1.msra.mxu0 %v134
    %362 = vmatprep.subr.mxu0 %v137
    %363 = vmatpush1.msra.mxu0 %v136
    %364 = vmatprep.subr.mxu0 %v139
    %365 = vmatpush1.msra.mxu0 %v138
    %366 = vmatprep.subr.mxu0 %v141
    %367 = vmatpush1.msra.mxu0 %v140
    %368 = vmatprep.subr.mxu0 %v143
    %369 = vmatpush1.msra.mxu0 %v142
    %370 = vmatprep.subr.mxu0 %v145
    %371 = vmatpush1.msra.mxu0 %v144
    %372 = vmatprep.subr.mxu0 %v147
    %373 = vmatpush1.msra.mxu0 %v146
    %374 = vmatprep.subr.mxu0 %v149
    %375 = vmatpush1.msra.mxu0 %v148
    %376 = vmatprep.subr.mxu0 %v151
    %377 = vmatpush1.msra.mxu0 %v150
    %378 = vmatprep.subr.mxu0 %v153
    %379 = vmatpush1.msra.mxu0 %v152
    %380 = vmatprep.subr.mxu0 %v155
    %381 = vmatpush1.msra.mxu0 %v154
    %382 = vmatprep.subr.mxu0 %v157
    %383 = vmatpush1.msra.mxu0 %v156
    %384 = vmatprep.subr.mxu0 %v159
    %385 = vmatpush1.msra.mxu0 %v158
    %386 = vmatprep.subr.mxu0 %v161
    %387 = vmatpush1.msra.mxu0 %v160
    %388 = vmatprep.subr.mxu0 0.0
    %389 = vmatpush1.msra.mxu0 0.0
    %390 = vmatprep.subr.mxu0 0.0
    %391 = vmatpush1.msra.mxu0 0.0
    %392 = vmatprep.subr.mxu0 0.0
    %393 = vmatpush1.msra.mxu0 0.0
    %394 = vmatprep.subr.mxu0 0.0
    %395 = vmatpush1.msra.mxu0 0.0
    %396 = vmatprep.subr.mxu0 0.0
    %397 = vmatpush1.msra.mxu0 0.0
    %398 = vmatprep.subr.mxu0 0.0
    %399 = vmatpush1.msra.mxu0 0.0
    %400 = vmatprep.subr.mxu0 0.0
    %401 = vmatpush1.msra.mxu0 0.0
    %402 = vmatprep.subr.mxu0 0.0
    %403 = vmatpush1.msra.mxu0 0.0
    %404 = vmatprep.subr.mxu0 0.0
    %405 = vmatpush1.msra.mxu0 0.0
    %406 = vmatprep.subr.mxu0 0.0
    %407 = vmatpush1.msra.mxu0 0.0
    %408 = vmatprep.subr.mxu0 0.0
    %409 = vmatpush1.msra.mxu0 0.0
    %410 = vmatprep.subr.mxu0 0.0
    %411 = vmatpush1.msra.mxu0 0.0
    %412 = vmatprep.subr.mxu0 0.0
    %413 = vmatpush1.msra.mxu0 0.0
    %414 = vmatprep.subr.mxu0 0.0
    %415 = vmatpush1.msra.mxu0 0.0
    %416 = vmatprep.subr.mxu0 0.0
    %417 = vmatpush1.msra.mxu0 0.0
    %418 = vmatprep.subr.mxu0 0.0
    %419 = vmatpush1.msra.mxu0 0.0
    %420 = vmatprep.mubr.f32.mxu0 0.0
    %421 = vmatmul.mubr.f32.gmra.mrb[0].mxu0 %v122
    %v422 = vpop.f32.mrb[0].mxu0
    %v423 = vadd.f32 %v346, %v422
    %v424 = vpop.f32.mrb[0].mxu0
    %v425 = vadd.f32 %v348, %v424
    %426 = vmatprep.mubr.f32.mxu0 0.0
    %427 = vmatmul.mubr.f32.gmra.mrb[0].mxu0 %v127
    %v428 = vpop.f32.mrb[0].mxu0
    %v429 = vadd.f32 %v352, %v428
    %v430 = vpop.f32.mrb[0].mxu0
    %v431 = vadd.f32 %v354, %v430
    %432 = vdwg.mxu0
    %s433 = scalar_lea.vmem %s1, 32
    %v434 = vld [vmem:[%s433] sm:$0xff]
    %v435 = vld [vmem:[%s433 + $0x8] sm:$0xff]
    %v437 = vsel %vm48, %v434, 0
    %v440 = vsel %vm48, %v435, 0
    %442 = vmatprep.subr.mxu0 0.0
    %443 = vmatpush1.msra.mxu0 %v42
    %444 = vmatprep.subr.mxu0 0.0
    %445 = vmatpush1.msra.mxu0 %v43
    %446 = vmatprep.subr.mxu0 0.0
    %447 = vmatpush1.msra.mxu0 %v44
    %448 = vmatprep.subr.mxu0 0.0
    %449 = vmatpush1.msra.mxu0 %v45
    %450 = vmatprep.subr.mxu0 0.0
    %451 = vmatpush1.msra.mxu0 0.0
    %452 = vmatprep.subr.mxu0 0.0
    %453 = vmatpush1.msra.mxu0 0.0
    %454 = vmatprep.subr.mxu0 0.0
    %455 = vmatpush1.msra.mxu0 0.0
    %456 = vmatprep.subr.mxu0 0.0
    %457 = vmatpush1.msra.mxu0 0.0
    %458 = vmatprep.subr.mxu0 0.0
    %459 = vmatpush1.msra.mxu0 0.0
    %460 = vmatprep.subr.mxu0 0.0
    %461 = vmatpush1.msra.mxu0 0.0
    %462 = vmatprep.subr.mxu0 0.0
    %463 = vmatpush1.msra.mxu0 0.0
    %464 = vmatprep.subr.mxu0 0.0
    %465 = vmatpush1.msra.mxu0 0.0
    %466 = vmatprep.subr.mxu0 0.0
    %467 = vmatpush1.msra.mxu0 0.0
    %468 = vmatprep.subr.mxu0 0.0
    %469 = vmatpush1.msra.mxu0 0.0
    %470 = vmatprep.subr.mxu0 0.0
    %471 = vmatpush1.msra.mxu0 0.0
    %472 = vmatprep.subr.mxu0 0.0
    %473 = vmatpush1.msra.mxu0 0.0
    %474 = vmatprep.subr.mxu0 0.0
    %475 = vmatpush1.msra.mxu0 0.0
    %476 = vmatprep.subr.mxu0 0.0
    %477 = vmatpush1.msra.mxu0 0.0
    %478 = vmatprep.subr.mxu0 0.0
    %479 = vmatpush1.msra.mxu0 0.0
    %480 = vmatprep.subr.mxu0 0.0
    %481 = vmatpush1.msra.mxu0 0.0
    %482 = vmatprep.subr.mxu0 0.0
    %483 = vmatpush1.msra.mxu0 0.0
    %484 = vmatprep.subr.mxu0 0.0
    %485 = vmatpush1.msra.mxu0 0.0
    %486 = vmatprep.subr.mxu0 0.0
    %487 = vmatpush1.msra.mxu0 0.0
    %488 = vmatprep.subr.mxu0 0.0
    %489 = vmatpush1.msra.mxu0 0.0
    %490 = vmatprep.subr.mxu0 0.0
    %491 = vmatpush1.msra.mxu0 0.0
    %492 = vmatprep.subr.mxu0 0.0
    %493 = vmatpush1.msra.mxu0 0.0
    %494 = vmatprep.subr.mxu0 0.0
    %495 = vmatpush1.msra.mxu0 0.0
    %496 = vmatprep.subr.mxu0 0.0
    %497 = vmatpush1.msra.mxu0 0.0
    %498 = vmatprep.subr.mxu0 0.0
    %499 = vmatpush1.msra.mxu0 0.0
    %500 = vmatprep.subr.mxu0 0.0
    %501 = vmatpush1.msra.mxu0 0.0
    %502 = vmatprep.subr.mxu0 0.0
    %503 = vmatpush1.msra.mxu0 0.0
    %504 = vmatprep.subr.mxu0 0.0
    %505 = vmatpush1.msra.mxu0 0.0
    %506 = vmatprep.mubr.f32.mxu0 0.0
    %507 = vmatmul.mubr.f32.gmra.mrb[0].mxu0 %v437
    %v508 = vpop.f32.mrb[0].mxu0
    %v509 = vadd.f32 0.0, %v508
    %v510 = vpop.f32.mrb[0].mxu0
    %511 = vmatprep.mubr.f32.mxu0 0.0
    %512 = vmatmul.mubr.f32.gmra.mrb[0].mxu0 %v440
    %v513 = vpop.f32.mrb[0].mxu0
    %v514 = vadd.f32 0.0, %v513
    %v515 = vpop.f32.mrb[0].mxu0
    %516 = vdwg.mxu0
    %s517 = scalar_lea.vmem %s2, 512
    %v518 = vld [vmem:[%s517] sm:$0xff]
    %v519 = vld [vmem:[%s517 + $0x8] sm:$0xff]
    %v520 = vld [vmem:[%s517 + $0x10] sm:$0xff]
    %v521 = vld [vmem:[%s517 + $0x18] sm:$0xff]
    %v522 = vld [vmem:[%s517 + $0x20] sm:$0xff]
    %v523 = vld [vmem:[%s517 + $0x28] sm:$0xff]
    %v524 = vld [vmem:[%s517 + $0x30] sm:$0xff]
    %v525 = vld [vmem:[%s517 + $0x38] sm:$0xff]
    %v526 = vld [vmem:[%s517 + $0x40] sm:$0xff]
    %v527 = vld [vmem:[%s517 + $0x48] sm:$0xff]
    %v528 = vld [vmem:[%s517 + $0x50] sm:$0xff]
    %v529 = vld [vmem:[%s517 + $0x58] sm:$0xff]
    %v530 = vld [vmem:[%s517 + $0x60] sm:$0xff]
    %v531 = vld [vmem:[%s517 + $0x68] sm:$0xff]
    %v532 = vld [vmem:[%s517 + $0x70] sm:$0xff]
    %v533 = vld [vmem:[%s517 + $0x78] sm:$0xff]
    %v534 = vld [vmem:[%s517 + $0x80] sm:$0xff]
    %v535 = vld [vmem:[%s517 + $0x88] sm:$0xff]
    %v536 = vld [vmem:[%s517 + $0x90] sm:$0xff]
    %v537 = vld [vmem:[%s517 + $0x98] sm:$0xff]
    %v538 = vld [vmem:[%s517 + $0xa0] sm:$0xff]
    %v539 = vld [vmem:[%s517 + $0xa8] sm:$0xff]
    %v540 = vld [vmem:[%s517 + $0xb0] sm:$0xff]
    %v541 = vld [vmem:[%s517 + $0xb8] sm:$0xff]
    %v542 = vld [vmem:[%s517 + $0xc0] sm:$0xff]
    %v543 = vld [vmem:[%s517 + $0xc8] sm:$0xff]
    %v544 = vld [vmem:[%s517 + $0xd0] sm:$0xff]
    %v545 = vld [vmem:[%s517 + $0xd8] sm:$0xff]
    %v546 = vld [vmem:[%s517 + $0xe0] sm:$0xff]
    %v547 = vld [vmem:[%s517 + $0xe8] sm:$0xff]
    %v548 = vld [vmem:[%s517 + $0xf0] sm:$0xff]
    %v549 = vld [vmem:[%s517 + $0xf8] sm:$0xff]
    %550 = vmatprep.subr.mxu0 %v519
    %551 = vmatpush1.msra.mxu0 %v518
    %552 = vmatprep.subr.mxu0 %v521
    %553 = vmatpush1.msra.mxu0 %v520
    %554 = vmatprep.subr.mxu0 %v523
    %555 = vmatpush1.msra.mxu0 %v522
    %556 = vmatprep.subr.mxu0 %v525
    %557 = vmatpush1.msra.mxu0 %v524
    %558 = vmatprep.subr.mxu0 %v527
    %559 = vmatpush1.msra.mxu0 %v526
    %560 = vmatprep.subr.mxu0 %v529
    %561 = vmatpush1.msra.mxu0 %v528
    %562 = vmatprep.subr.mxu0 %v531
    %563 = vmatpush1.msra.mxu0 %v530
    %564 = vmatprep.subr.mxu0 %v533
    %565 = vmatpush1.msra.mxu0 %v532
    %566 = vmatprep.subr.mxu0 %v535
    %567 = vmatpush1.msra.mxu0 %v534
    %568 = vmatprep.subr.mxu0 %v537
    %569 = vmatpush1.msra.mxu0 %v536
    %570 = vmatprep.subr.mxu0 %v539
    %571 = vmatpush1.msra.mxu0 %v538
    %572 = vmatprep.subr.mxu0 %v541
    %573 = vmatpush1.msra.mxu0 %v540
    %574 = vmatprep.subr.mxu0 %v543
    %575 = vmatpush1.msra.mxu0 %v542
    %576 = vmatprep.subr.mxu0 %v545
    %577 = vmatpush1.msra.mxu0 %v544
    %578 = vmatprep.subr.mxu0 %v547
    %579 = vmatpush1.msra.mxu0 %v546
    %580 = vmatprep.subr.mxu0 %v549
    %581 = vmatpush1.msra.mxu0 %v548
    %582 = vmatprep.subr.mxu0 0.0
    %583 = vmatpush1.msra.mxu0 0.0
    %584 = vmatprep.subr.mxu0 0.0
    %585 = vmatpush1.msra.mxu0 0.0
    %586 = vmatprep.subr.mxu0 0.0
    %587 = vmatpush1.msra.mxu0 0.0
    %588 = vmatprep.subr.mxu0 0.0
    %589 = vmatpush1.msra.mxu0 0.0
    %590 = vmatprep.subr.mxu0 0.0
    %591 = vmatpush1.msra.mxu0 0.0
    %592 = vmatprep.subr.mxu0 0.0
    %593 = vmatpush1.msra.mxu0 0.0
    %594 = vmatprep.subr.mxu0 0.0
    %595 = vmatpush1.msra.mxu0 0.0
    %596 = vmatprep.subr.mxu0 0.0
    %597 = vmatpush1.msra.mxu0 0.0
    %598 = vmatprep.subr.mxu0 0.0
    %599 = vmatpush1.msra.mxu0 0.0
    %600 = vmatprep.subr.mxu0 0.0
    %601 = vmatpush1.msra.mxu0 0.0
    %602 = vmatprep.subr.mxu0 0.0
    %603 = vmatpush1.msra.mxu0 0.0
    %604 = vmatprep.subr.mxu0 0.0
    %605 = vmatpush1.msra.mxu0 0.0
    %606 = vmatprep.subr.mxu0 0.0
    %607 = vmatpush1.msra.mxu0 0.0
    %608 = vmatprep.subr.mxu0 0.0
    %609 = vmatpush1.msra.mxu0 0.0
    %610 = vmatprep.subr.mxu0 0.0
    %611 = vmatpush1.msra.mxu0 0.0
    %612 = vmatprep.subr.mxu0 0.0
    %613 = vmatpush1.msra.mxu0 0.0
    %614 = vmatprep.mubr.f32.mxu0 0.0
    %615 = vmatmul.mubr.f32.gmra.mrb[0].mxu0 %v509
    %v616 = vpop.f32.mrb[0].mxu0
    %v617 = vadd.f32 0.0, %v616
    %v618 = vpop.f32.mrb[0].mxu0
    %v619 = vadd.f32 0.0, %v618
    %620 = vmatprep.mubr.f32.mxu0 0.0
    %621 = vmatmul.mubr.f32.gmra.mrb[0].mxu0 %v514
    %v622 = vpop.f32.mrb[0].mxu0
    %v623 = vadd.f32 0.0, %v622
    %v624 = vpop.f32.mrb[0].mxu0
    %v625 = vadd.f32 0.0, %v624
    %626 = vdwg.mxu0
    %v627 = vadd.f32 %v423, %v617
    %v628 = vadd.f32 %v425, %v619
    %v629 = vadd.f32 %v429, %v623
    %v630 = vadd.f32 %v431, %v625
    %v631 = vld [vmem:[%s3] sm:$0x3]
    %v633 = vlaneseq
    %v634 = vshrl.u32 %v633, 7
    %v635 = vsub.s32 0, %v634
    %v636 = vrot.slane %v631, %v635
    %v637 = vlaneseq
    %v638 = vshrl.u32 %v637, 7
    %v639 = vsub.s32 1, %v638
    %v640 = vrot.slane %v631, %v639
    %v643 = vadd.f32 %v627, %v636
    %v644 = vadd.f32 %v628, %v640
    %v645 = vadd.f32 %v629, %v636
    %v646 = vadd.f32 %v630, %v640
    %647 = vst [vmem:[%s7] sm:$0xff] %v643
    %648 = vst [vmem:[%s7 + $0x8] sm:$0xff] %v644
    %649 = vst [vmem:[%s7 + $0x10] sm:$0xff] %v645
    %650 = vst [vmem:[%s7 + $0x18] sm:$0xff] %v646
    %v651 = vmax.f32 %v643, 0.0
    %v652 = vmax.f32 %v644, 0.0
    %v653 = vmax.f32 %v645, 0.0
    %v654 = vmax.f32 %v646, 0.0
    %v655 = vld [vmem:[%s4] sm:$0xff]
    %vm656 = vcmask 130048
    %v658 = vsel %vm656, %v655, 0
    %660 = vmatprep.subr.mxu0 %v652
    %661 = vmatpush1.msra.mxu0 %v651
    %662 = vmatprep.subr.mxu0 %v654
    %663 = vmatpush1.msra.mxu0 %v653
    %664 = vmatprep.subr.mxu0 0.0
    %665 = vmatpush1.msra.mxu0 0.0
    %666 = vmatprep.subr.mxu0 0.0
    %667 = vmatpush1.msra.mxu0 0.0
    %668 = vmatprep.subr.mxu0 0.0
    %669 = vmatpush1.msra.mxu0 0.0
    %670 = vmatprep.subr.mxu0 0.0
    %671 = vmatpush1.msra.mxu0 0.0
    %672 = vmatprep.subr.mxu0 0.0
    %673 = vmatpush1.msra.mxu0 0.0
    %674 = vmatprep.subr.mxu0 0.0
    %675 = vmatpush1.msra.mxu0 0.0
    %676 = vmatprep.subr.mxu0 0.0
    %677 = vmatpush1.msra.mxu0 0.0
    %678 = vmatprep.subr.mxu0 0.0
    %679 = vmatpush1.msra.mxu0 0.0
    %680 = vmatprep.subr.mxu0 0.0
    %681 = vmatpush1.msra.mxu0 0.0
    %682 = vmatprep.subr.mxu0 0.0
    %683 = vmatpush1.msra.mxu0 0.0
    %684 = vmatprep.subr.mxu0 0.0
    %685 = vmatpush1.msra.mxu0 0.0
    %686 = vmatprep.subr.mxu0 0.0
    %687 = vmatpush1.msra.mxu0 0.0
    %688 = vmatprep.subr.mxu0 0.0
    %689 = vmatpush1.msra.mxu0 0.0
    %690 = vmatprep.subr.mxu0 0.0
    %691 = vmatpush1.msra.mxu0 0.0
    %692 = vmatprep.subr.mxu0 0.0
    %693 = vmatpush1.msra.mxu0 0.0
    %694 = vmatprep.subr.mxu0 0.0
    %695 = vmatpush1.msra.mxu0 0.0
    %696 = vmatprep.subr.mxu0 0.0
    %697 = vmatpush1.msra.mxu0 0.0
    %698 = vmatprep.subr.mxu0 0.0
    %699 = vmatpush1.msra.mxu0 0.0
    %700 = vmatprep.subr.mxu0 0.0
    %701 = vmatpush1.msra.mxu0 0.0
    %702 = vmatprep.subr.mxu0 0.0
    %703 = vmatpush1.msra.mxu0 0.0
    %704 = vmatprep.subr.mxu0 0.0
    %705 = vmatpush1.msra.mxu0 0.0
    %706 = vmatprep.subr.mxu0 0.0
    %707 = vmatpush1.msra.mxu0 0.0
    %708 = vmatprep.subr.mxu0 0.0
    %709 = vmatpush1.msra.mxu0 0.0
    %710 = vmatprep.subr.mxu0 0.0
    %711 = vmatpush1.msra.mxu0 0.0
    %712 = vmatprep.subr.mxu0 0.0
    %713 = vmatpush1.msra.mxu0 0.0
    %714 = vmatprep.subr.mxu0 0.0
    %715 = vmatpush1.msra.mxu0 0.0
    %716 = vmatprep.subr.mxu0 0.0
    %717 = vmatpush1.msra.mxu0 0.0
    %718 = vmatprep.subr.mxu0 0.0
    %719 = vmatpush1.msra.mxu0 0.0
    %720 = vmatprep.subr.mxu0 0.0
    %721 = vmatpush1.msra.mxu0 0.0
    %722 = vmatprep.subr.mxu0 0.0
    %723 = vmatpush1.msra.mxu0 0.0
    %724 = vmatprep.mubr.f32.mxu0 0.0
    %725 = vmatmul.mubr.f32.gmra.mrb[0].mxu0 %v658
    %v726 = vpop.f32.mrb[0].mxu0
    %v727 = vadd.f32 0.0, %v726
    %v728 = vpop.f32.mrb[0].mxu0
    %v729 = vadd.f32 0.0, %v728
    %730 = vdwg.mxu0
    %v731 = vld [vmem:[#allocation2] sm:$0xff]
    %v732 = vld [vmem:[#allocation2 + $0x8] sm:$0xff]
    %v733 = vld [vmem:[#allocation2 + $0x10] sm:$0xff]
    %v734 = vld [vmem:[#allocation2 + $0x18] sm:$0xff]
    %v735 = vld [vmem:[#allocation2 + $0x20] sm:$0xff]
    %v736 = vld [vmem:[#allocation2 + $0x28] sm:$0xff]
    %v737 = vld [vmem:[#allocation2 + $0x30] sm:$0xff]
    %v738 = vld [vmem:[#allocation2 + $0x38] sm:$0xff]
    %v739 = vld [vmem:[#allocation2 + $0x40] sm:$0xff]
    %v740 = vld [vmem:[#allocation2 + $0x48] sm:$0xff]
    %v741 = vld [vmem:[#allocation2 + $0x50] sm:$0xff]
    %v742 = vld [vmem:[#allocation2 + $0x58] sm:$0xff]
    %v743 = vld [vmem:[#allocation2 + $0x60] sm:$0xff]
    %v744 = vld [vmem:[#allocation2 + $0x68] sm:$0xff]
    %v745 = vld [vmem:[#allocation2 + $0x70] sm:$0xff]
    %v746 = vld [vmem:[#allocation2 + $0x78] sm:$0xff]
    %v747 = vld [vmem:[#allocation2 + $0x80] sm:$0xff]
    %v748 = vld [vmem:[#allocation2 + $0x88] sm:$0xff]
    %v749 = vld [vmem:[#allocation2 + $0x90] sm:$0xff]
    %v750 = vld [vmem:[#allocation2 + $0x98] sm:$0xff]
    %v751 = vld [vmem:[#allocation2 + $0xa0] sm:$0xff]
    %v752 = vld [vmem:[#allocation2 + $0xa8] sm:$0xff]
    %v753 = vld [vmem:[#allocation2 + $0xb0] sm:$0xff]
    %v754 = vld [vmem:[#allocation2 + $0xb8] sm:$0xff]
    %v755 = vld [vmem:[#allocation2 + $0xc0] sm:$0xff]
    %v756 = vld [vmem:[#allocation2 + $0xc8] sm:$0xff]
    %v757 = vld [vmem:[#allocation2 + $0xd0] sm:$0xff]
    %v758 = vld [vmem:[#allocation2 + $0xd8] sm:$0xff]
    %v759 = vld [vmem:[#allocation2 + $0xe0] sm:$0xff]
    %v760 = vld [vmem:[#allocation2 + $0xe8] sm:$0xff]
    %v761 = vld [vmem:[#allocation2 + $0xf0] sm:$0xff]
    %v762 = vld [vmem:[#allocation2 + $0xf8] sm:$0xff]
    %s763 = scalar_lea.vmem %s4, 8
    %v764 = vld [vmem:[%s763] sm:$0xff]
    %v766 = vsel %vm656, %v764, 0
    %768 = vmatprep.subr.mxu0 %v652
    %769 = vmatpush1.msra.mxu0 %v651
    %770 = vmatprep.subr.mxu0 %v654
    %771 = vmatpush1.msra.mxu0 %v653
    %772 = vmatprep.subr.mxu0 0.0
    %773 = vmatpush1.msra.mxu0 0.0
    %774 = vmatprep.subr.mxu0 0.0
    %775 = vmatpush1.msra.mxu0 0.0
    %776 = vmatprep.subr.mxu0 0.0
    %777 = vmatpush1.msra.mxu0 0.0
    %778 = vmatprep.subr.mxu0 0.0
    %779 = vmatpush1.msra.mxu0 0.0
    %780 = vmatprep.subr.mxu0 0.0
    %781 = vmatpush1.msra.mxu0 0.0
    %782 = vmatprep.subr.mxu0 0.0
    %783 = vmatpush1.msra.mxu0 0.0
    %784 = vmatprep.subr.mxu0 0.0
    %785 = vmatpush1.msra.mxu0 0.0
    %786 = vmatprep.subr.mxu0 0.0
    %787 = vmatpush1.msra.mxu0 0.0
    %788 = vmatprep.subr.mxu0 0.0
    %789 = vmatpush1.msra.mxu0 0.0
    %790 = vmatprep.subr.mxu0 0.0
    %791 = vmatpush1.msra.mxu0 0.0
    %792 = vmatprep.subr.mxu0 0.0
    %793 = vmatpush1.msra.mxu0 0.0
    %794 = vmatprep.subr.mxu0 0.0
    %795 = vmatpush1.msra.mxu0 0.0
    %796 = vmatprep.subr.mxu0 0.0
    %797 = vmatpush1.msra.mxu0 0.0
    %798 = vmatprep.subr.mxu0 0.0
    %799 = vmatpush1.msra.mxu0 0.0
    %800 = vmatprep.subr.mxu0 0.0
    %801 = vmatpush1.msra.mxu0 0.0
    %802 = vmatprep.subr.mxu0 0.0
    %803 = vmatpush1.msra.mxu0 0.0
    %804 = vmatprep.subr.mxu0 0.0
    %805 = vmatpush1.msra.mxu0 0.0
    %806 = vmatprep.subr.mxu0 0.0
    %807 = vmatpush1.msra.mxu0 0.0
    %808 = vmatprep.subr.mxu0 0.0
    %809 = vmatpush1.msra.mxu0 0.0
    %810 = vmatprep.subr.mxu0 0.0
    %811 = vmatpush1.msra.mxu0 0.0
    %812 = vmatprep.subr.mxu0 0.0
    %813 = vmatpush1.msra.mxu0 0.0
    %814 = vmatprep.subr.mxu0 0.0
    %815 = vmatpush1.msra.mxu0 0.0
    %816 = vmatprep.subr.mxu0 0.0
    %817 = vmatpush1.msra.mxu0 0.0
    %818 = vmatprep.subr.mxu0 0.0
    %819 = vmatpush1.msra.mxu0 0.0
    %820 = vmatprep.subr.mxu0 0.0
    %821 = vmatpush1.msra.mxu0 0.0
    %822 = vmatprep.subr.mxu0 0.0
    %823 = vmatpush1.msra.mxu0 0.0
    %824 = vmatprep.subr.mxu0 0.0
    %825 = vmatpush1.msra.mxu0 0.0
    %826 = vmatprep.subr.mxu0 0.0
    %827 = vmatpush1.msra.mxu0 0.0
    %828 = vmatprep.subr.mxu0 0.0
    %829 = vmatpush1.msra.mxu0 0.0
    %830 = vmatprep.subr.mxu0 0.0
    %831 = vmatpush1.msra.mxu0 0.0
    %832 = vmatprep.mubr.f32.mxu0 0.0
    %833 = vmatmul.mubr.f32.gmra.mrb[0].mxu0 %v766
    %v834 = vpop.f32.mrb[0].mxu0
    %v835 = vadd.f32 0.0, %v834
    %v836 = vpop.f32.mrb[0].mxu0
    %v837 = vadd.f32 0.0, %v836
    %838 = vdwg.mxu0
    %s839 = scalar_lea.vmem [#allocation2], 256
    %v840 = vld [vmem:[%s839] sm:$0xff]
    %v841 = vld [vmem:[%s839 + $0x8] sm:$0xff]
    %v842 = vld [vmem:[%s839 + $0x10] sm:$0xff]
    %v843 = vld [vmem:[%s839 + $0x18] sm:$0xff]
    %v844 = vld [vmem:[%s839 + $0x20] sm:$0xff]
    %v845 = vld [vmem:[%s839 + $0x28] sm:$0xff]
    %v846 = vld [vmem:[%s839 + $0x30] sm:$0xff]
    %v847 = vld [vmem:[%s839 + $0x38] sm:$0xff]
    %v848 = vld [vmem:[%s839 + $0x40] sm:$0xff]
    %v849 = vld [vmem:[%s839 + $0x48] sm:$0xff]
    %v850 = vld [vmem:[%s839 + $0x50] sm:$0xff]
    %v851 = vld [vmem:[%s839 + $0x58] sm:$0xff]
    %v852 = vld [vmem:[%s839 + $0x60] sm:$0xff]
    %v853 = vld [vmem:[%s839 + $0x68] sm:$0xff]
    %v854 = vld [vmem:[%s839 + $0x70] sm:$0xff]
    %v855 = vld [vmem:[%s839 + $0x78] sm:$0xff]
    %v856 = vld [vmem:[%s839 + $0x80] sm:$0xff]
    %v857 = vld [vmem:[%s839 + $0x88] sm:$0xff]
    %v858 = vld [vmem:[%s839 + $0x90] sm:$0xff]
    %v859 = vld [vmem:[%s839 + $0x98] sm:$0xff]
    %v860 = vld [vmem:[%s839 + $0xa0] sm:$0xff]
    %v861 = vld [vmem:[%s839 + $0xa8] sm:$0xff]
    %v862 = vld [vmem:[%s839 + $0xb0] sm:$0xff]
    %v863 = vld [vmem:[%s839 + $0xb8] sm:$0xff]
    %v864 = vld [vmem:[%s839 + $0xc0] sm:$0xff]
    %v865 = vld [vmem:[%s839 + $0xc8] sm:$0xff]
    %v866 = vld [vmem:[%s839 + $0xd0] sm:$0xff]
    %v867 = vld [vmem:[%s839 + $0xd8] sm:$0xff]
    %v868 = vld [vmem:[%s839 + $0xe0] sm:$0xff]
    %v869 = vld [vmem:[%s839 + $0xe8] sm:$0xff]
    %v870 = vld [vmem:[%s839 + $0xf0] sm:$0xff]
    %v871 = vld [vmem:[%s839 + $0xf8] sm:$0xff]
    %872 = vmatprep.subr.mxu0 0.0
    %873 = vmatpush1.msra.mxu0 %v840
    %874 = vmatprep.subr.mxu0 0.0
    %875 = vmatpush1.msra.mxu0 %v841
    %876 = vmatprep.subr.mxu0 0.0
    %877 = vmatpush1.msra.mxu0 %v842
    %878 = vmatprep.subr.mxu0 0.0
    %879 = vmatpush1.msra.mxu0 %v843
    %880 = vmatprep.subr.mxu0 0.0
    %881 = vmatpush1.msra.mxu0 %v844
    %882 = vmatprep.subr.mxu0 0.0
    %883 = vmatpush1.msra.mxu0 %v845
    %884 = vmatprep.subr.mxu0 0.0
    %885 = vmatpush1.msra.mxu0 %v846
    %886 = vmatprep.subr.mxu0 0.0
    %887 = vmatpush1.msra.mxu0 %v847
    %888 = vmatprep.subr.mxu0 0.0
    %889 = vmatpush1.msra.mxu0 %v848
    %890 = vmatprep.subr.mxu0 0.0
    %891 = vmatpush1.msra.mxu0 %v849
    %892 = vmatprep.subr.mxu0 0.0
    %893 = vmatpush1.msra.mxu0 %v850
    %894 = vmatprep.subr.mxu0 0.0
    %895 = vmatpush1.msra.mxu0 %v851
    %896 = vmatprep.subr.mxu0 0.0
    %897 = vmatpush1.msra.mxu0 %v852
    %898 = vmatprep.subr.mxu0 0.0
    %899 = vmatpush1.msra.mxu0 %v853
    %900 = vmatprep.subr.mxu0 0.0
    %901 = vmatpush1.msra.mxu0 %v854
    %902 = vmatprep.subr.mxu0 0.0
    %903 = vmatpush1.msra.mxu0 %v855
    %904 = vmatprep.subr.mxu0 0.0
    %905 = vmatpush1.msra.mxu0 %v856
    %906 = vmatprep.subr.mxu0 0.0
    %907 = vmatpush1.msra.mxu0 %v857
    %908 = vmatprep.subr.mxu0 0.0
    %909 = vmatpush1.msra.mxu0 %v858
    %910 = vmatprep.subr.mxu0 0.0
    %911 = vmatpush1.msra.mxu0 %v859
    %912 = vmatprep.subr.mxu0 0.0
    %913 = vmatpush1.msra.mxu0 %v860
    %914 = vmatprep.subr.mxu0 0.0
    %915 = vmatpush1.msra.mxu0 %v861
    %916 = vmatprep.subr.mxu0 0.0
    %917 = vmatpush1.msra.mxu0 %v862
    %918 = vmatprep.subr.mxu0 0.0
    %919 = vmatpush1.msra.mxu0 %v863
    %920 = vmatprep.subr.mxu0 0.0
    %921 = vmatpush1.msra.mxu0 %v864
    %922 = vmatprep.subr.mxu0 0.0
    %923 = vmatpush1.msra.mxu0 %v865
    %924 = vmatprep.subr.mxu0 0.0
    %925 = vmatpush1.msra.mxu0 %v866
    %926 = vmatprep.subr.mxu0 0.0
    %927 = vmatpush1.msra.mxu0 %v867
    %928 = vmatprep.subr.mxu0 0.0
    %929 = vmatpush1.msra.mxu0 %v868
    %930 = vmatprep.subr.mxu0 0.0
    %931 = vmatpush1.msra.mxu0 %v869
    %932 = vmatprep.subr.mxu0 0.0
    %933 = vmatpush1.msra.mxu0 %v870
    %934 = vmatprep.subr.mxu0 0.0
    %935 = vmatpush1.msra.mxu0 %v871
    %936 = vmatprep.mubr.f32.mxu0 %v837
    %937 = vmatmul.mubr.f32.gmra.mrb[0].mxu0 %v835
    %v938 = vpop.f32.mrb[0].mxu0
    %v939 = vadd.f32 0.0, %v938
    %v940 = vpop.f32.mrb[0].mxu0
    %941 = vdwg.mxu0
    %942 = vmatprep.subr.mxu0 0.0
    %943 = vmatpush1.msra.mxu0 %v731
    %944 = vmatprep.subr.mxu0 0.0
    %945 = vmatpush1.msra.mxu0 %v732
    %946 = vmatprep.subr.mxu0 0.0
    %947 = vmatpush1.msra.mxu0 %v733
    %948 = vmatprep.subr.mxu0 0.0
    %949 = vmatpush1.msra.mxu0 %v734
    %950 = vmatprep.subr.mxu0 0.0
    %951 = vmatpush1.msra.mxu0 %v735
    %952 = vmatprep.subr.mxu0 0.0
    %953 = vmatpush1.msra.mxu0 %v736
    %954 = vmatprep.subr.mxu0 0.0
    %955 = vmatpush1.msra.mxu0 %v737
    %956 = vmatprep.subr.mxu0 0.0
    %957 = vmatpush1.msra.mxu0 %v738
    %958 = vmatprep.subr.mxu0 0.0
    %959 = vmatpush1.msra.mxu0 %v739
    %960 = vmatprep.subr.mxu0 0.0
    %961 = vmatpush1.msra.mxu0 %v740
    %962 = vmatprep.subr.mxu0 0.0
    %963 = vmatpush1.msra.mxu0 %v741
    %964 = vmatprep.subr.mxu0 0.0
    %965 = vmatpush1.msra.mxu0 %v742
    %966 = vmatprep.subr.mxu0 0.0
    %967 = vmatpush1.msra.mxu0 %v743
    %968 = vmatprep.subr.mxu0 0.0
    %969 = vmatpush1.msra.mxu0 %v744
    %970 = vmatprep.subr.mxu0 0.0
    %971 = vmatpush1.msra.mxu0 %v745
    %972 = vmatprep.subr.mxu0 0.0
    %973 = vmatpush1.msra.mxu0 %v746
    %974 = vmatprep.subr.mxu0 0.0
    %975 = vmatpush1.msra.mxu0 %v747
    %976 = vmatprep.subr.mxu0 0.0
    %977 = vmatpush1.msra.mxu0 %v748
    %978 = vmatprep.subr.mxu0 0.0
    %979 = vmatpush1.msra.mxu0 %v749
    %980 = vmatprep.subr.mxu0 0.0
    %981 = vmatpush1.msra.mxu0 %v750
    %982 = vmatprep.subr.mxu0 0.0
    %983 = vmatpush1.msra.mxu0 %v751
    %984 = vmatprep.subr.mxu0 0.0
    %985 = vmatpush1.msra.mxu0 %v752
    %986 = vmatprep.subr.mxu0 0.0
    %987 = vmatpush1.msra.mxu0 %v753
    %988 = vmatprep.subr.mxu0 0.0
    %989 = vmatpush1.msra.mxu0 %v754
    %990 = vmatprep.subr.mxu0 0.0
    %991 = vmatpush1.msra.mxu0 %v755
    %992 = vmatprep.subr.mxu0 0.0
    %993 = vmatpush1.msra.mxu0 %v756
    %994 = vmatprep.subr.mxu0 0.0
    %995 = vmatpush1.msra.mxu0 %v757
    %996 = vmatprep.subr.mxu0 0.0
    %997 = vmatpush1.msra.mxu0 %v758
    %998 = vmatprep.subr.mxu0 0.0
    %999 = vmatpush1.msra.mxu0 %v759
    %1000 = vmatprep.subr.mxu0 0.0
    %1001 = vmatpush1.msra.mxu0 %v760
    %1002 = vmatprep.subr.mxu0 0.0
    %1003 = vmatpush1.msra.mxu0 %v761
    %1004 = vmatprep.subr.mxu0 0.0
    %1005 = vmatpush1.msra.mxu0 %v762
    %1006 = vmatprep.mubr.f32.mxu0 %v729
    %1007 = vmatmul.mubr.f32.gmra.mrb[0].mxu0 %v727
    %v1008 = vpop.f32.mrb[0].mxu0
    %v1009 = vadd.f32 %v939, %v1008
    %v1010 = vpop.f32.mrb[0].mxu0
    %1011 = vdwg.mxu0
    %s1012 = scalar_lea.vmem %s4, 16
    %v1013 = vld [vmem:[%s1012] sm:$0xff]
    %v1015 = vsel %vm656, %v1013, 0
    %1017 = vmatprep.subr.mxu0 %v652
    %1018 = vmatpush1.msra.mxu0 %v651
    %1019 = vmatprep.subr.mxu0 %v654
    %1020 = vmatpush1.msra.mxu0 %v653
    %1021 = vmatprep.subr.mxu0 0.0
    %1022 = vmatpush1.msra.mxu0 0.0
    %1023 = vmatprep.subr.mxu0 0.0
    %1024 = vmatpush1.msra.mxu0 0.0
    %1025 = vmatprep.subr.mxu0 0.0
    %1026 = vmatpush1.msra.mxu0 0.0
    %1027 = vmatprep.subr.mxu0 0.0
    %1028 = vmatpush1.msra.mxu0 0.0
    %1029 = vmatprep.subr.mxu0 0.0
    %1030 = vmatpush1.msra.mxu0 0.0
    %1031 = vmatprep.subr.mxu0 0.0
    %1032 = vmatpush1.msra.mxu0 0.0
    %1033 = vmatprep.subr.mxu0 0.0
    %1034 = vmatpush1.msra.mxu0 0.0
    %1035 = vmatprep.subr.mxu0 0.0
    %1036 = vmatpush1.msra.mxu0 0.0
    %1037 = vmatprep.subr.mxu0 0.0
    %1038 = vmatpush1.msra.mxu0 0.0
    %1039 = vmatprep.subr.mxu0 0.0
    %1040 = vmatpush1.msra.mxu0 0.0
    %1041 = vmatprep.subr.mxu0 0.0
    %1042 = vmatpush1.msra.mxu0 0.0
    %1043 = vmatprep.subr.mxu0 0.0
    %1044 = vmatpush1.msra.mxu0 0.0
    %1045 = vmatprep.subr.mxu0 0.0
    %1046 = vmatpush1.msra.mxu0 0.0
    %1047 = vmatprep.subr.mxu0 0.0
    %1048 = vmatpush1.msra.mxu0 0.0
    %1049 = vmatprep.subr.mxu0 0.0
    %1050 = vmatpush1.msra.mxu0 0.0
    %1051 = vmatprep.subr.mxu0 0.0
    %1052 = vmatpush1.msra.mxu0 0.0
    %1053 = vmatprep.subr.mxu0 0.0
    %1054 = vmatpush1.msra.mxu0 0.0
    %1055 = vmatprep.subr.mxu0 0.0
    %1056 = vmatpush1.msra.mxu0 0.0
    %1057 = vmatprep.subr.mxu0 0.0
    %1058 = vmatpush1.msra.mxu0 0.0
    %1059 = vmatprep.subr.mxu0 0.0
    %1060 = vmatpush1.msra.mxu0 0.0
    %1061 = vmatprep.subr.mxu0 0.0
    %1062 = vmatpush1.msra.mxu0 0.0
    %1063 = vmatprep.subr.mxu0 0.0
    %1064 = vmatpush1.msra.mxu0 0.0
    %1065 = vmatprep.subr.mxu0 0.0
    %1066 = vmatpush1.msra.mxu0 0.0
    %1067 = vmatprep.subr.mxu0 0.0
    %1068 = vmatpush1.msra.mxu0 0.0
    %1069 = vmatprep.subr.mxu0 0.0
    %1070 = vmatpush1.msra.mxu0 0.0
    %1071 = vmatprep.subr.mxu0 0.0
    %1072 = vmatpush1.msra.mxu0 0.0
    %1073 = vmatprep.subr.mxu0 0.0
    %1074 = vmatpush1.msra.mxu0 0.0
    %1075 = vmatprep.subr.mxu0 0.0
    %1076 = vmatpush1.msra.mxu0 0.0
    %1077 = vmatprep.subr.mxu0 0.0
    %1078 = vmatpush1.msra.mxu0 0.0
    %1079 = vmatprep.subr.mxu0 0.0
    %1080 = vmatpush1.msra.mxu0 0.0
    %1081 = vmatprep.mubr.f32.mxu0 0.0
    %1082 = vmatmul.mubr.f32.gmra.mrb[0].mxu0 %v1015
    %v1083 = vpop.f32.mrb[0].mxu0
    %v1084 = vadd.f32 0.0, %v1083
    %v1085 = vpop.f32.mrb[0].mxu0
    %v1086 = vadd.f32 0.0, %v1085
    %1087 = vdwg.mxu0
    %s1088 = scalar_lea.vmem [#allocation2], 512
    %v1089 = vld [vmem:[%s1088] sm:$0xff]
    %v1090 = vld [vmem:[%s1088 + $0x8] sm:$0xff]
    %v1091 = vld [vmem:[%s1088 + $0x10] sm:$0xff]
    %v1092 = vld [vmem:[%s1088 + $0x18] sm:$0xff]
    %v1093 = vld [vmem:[%s1088 + $0x20] sm:$0xff]
    %v1094 = vld [vmem:[%s1088 + $0x28] sm:$0xff]
    %v1095 = vld [vmem:[%s1088 + $0x30] sm:$0xff]
    %v1096 = vld [vmem:[%s1088 + $0x38] sm:$0xff]
    %v1097 = vld [vmem:[%s1088 + $0x40] sm:$0xff]
    %v1098 = vld [vmem:[%s1088 + $0x48] sm:$0xff]
    %v1099 = vld [vmem:[%s1088 + $0x50] sm:$0xff]
    %v1100 = vld [vmem:[%s1088 + $0x58] sm:$0xff]
    %v1101 = vld [vmem:[%s1088 + $0x60] sm:$0xff]
    %v1102 = vld [vmem:[%s1088 + $0x68] sm:$0xff]
    %v1103 = vld [vmem:[%s1088 + $0x70] sm:$0xff]
    %v1104 = vld [vmem:[%s1088 + $0x78] sm:$0xff]
    %v1105 = vld [vmem:[%s1088 + $0x80] sm:$0xff]
    %v1106 = vld [vmem:[%s1088 + $0x88] sm:$0xff]
    %v1107 = vld [vmem:[%s1088 + $0x90] sm:$0xff]
    %v1108 = vld [vmem:[%s1088 + $0x98] sm:$0xff]
    %v1109 = vld [vmem:[%s1088 + $0xa0] sm:$0xff]
    %v1110 = vld [vmem:[%s1088 + $0xa8] sm:$0xff]
    %v1111 = vld [vmem:[%s1088 + $0xb0] sm:$0xff]
    %v1112 = vld [vmem:[%s1088 + $0xb8] sm:$0xff]
    %v1113 = vld [vmem:[%s1088 + $0xc0] sm:$0xff]
    %v1114 = vld [vmem:[%s1088 + $0xc8] sm:$0xff]
    %v1115 = vld [vmem:[%s1088 + $0xd0] sm:$0xff]
    %v1116 = vld [vmem:[%s1088 + $0xd8] sm:$0xff]
    %v1117 = vld [vmem:[%s1088 + $0xe0] sm:$0xff]
    %v1118 = vld [vmem:[%s1088 + $0xe8] sm:$0xff]
    %v1119 = vld [vmem:[%s1088 + $0xf0] sm:$0xff]
    %v1120 = vld [vmem:[%s1088 + $0xf8] sm:$0xff]
    %1121 = vmatprep.subr.mxu0 0.0
    %1122 = vmatpush1.msra.mxu0 %v1089
    %1123 = vmatprep.subr.mxu0 0.0
    %1124 = vmatpush1.msra.mxu0 %v1090
    %1125 = vmatprep.subr.mxu0 0.0
    %1126 = vmatpush1.msra.mxu0 %v1091
    %1127 = vmatprep.subr.mxu0 0.0
    %1128 = vmatpush1.msra.mxu0 %v1092
    %1129 = vmatprep.subr.mxu0 0.0
    %1130 = vmatpush1.msra.mxu0 %v1093
    %1131 = vmatprep.subr.mxu0 0.0
    %1132 = vmatpush1.msra.mxu0 %v1094
    %1133 = vmatprep.subr.mxu0 0.0
    %1134 = vmatpush1.msra.mxu0 %v1095
    %1135 = vmatprep.subr.mxu0 0.0
    %1136 = vmatpush1.msra.mxu0 %v1096
    %1137 = vmatprep.subr.mxu0 0.0
    %1138 = vmatpush1.msra.mxu0 %v1097
    %1139 = vmatprep.subr.mxu0 0.0
    %1140 = vmatpush1.msra.mxu0 %v1098
    %1141 = vmatprep.subr.mxu0 0.0
    %1142 = vmatpush1.msra.mxu0 %v1099
    %1143 = vmatprep.subr.mxu0 0.0
    %1144 = vmatpush1.msra.mxu0 %v1100
    %1145 = vmatprep.subr.mxu0 0.0
    %1146 = vmatpush1.msra.mxu0 %v1101
    %1147 = vmatprep.subr.mxu0 0.0
    %1148 = vmatpush1.msra.mxu0 %v1102
    %1149 = vmatprep.subr.mxu0 0.0
    %1150 = vmatpush1.msra.mxu0 %v1103
    %1151 = vmatprep.subr.mxu0 0.0
    %1152 = vmatpush1.msra.mxu0 %v1104
    %1153 = vmatprep.subr.mxu0 0.0
    %1154 = vmatpush1.msra.mxu0 %v1105
    %1155 = vmatprep.subr.mxu0 0.0
    %1156 = vmatpush1.msra.mxu0 %v1106
    %1157 = vmatprep.subr.mxu0 0.0
    %1158 = vmatpush1.msra.mxu0 %v1107
    %1159 = vmatprep.subr.mxu0 0.0
    %1160 = vmatpush1.msra.mxu0 %v1108
    %1161 = vmatprep.subr.mxu0 0.0
    %1162 = vmatpush1.msra.mxu0 %v1109
    %1163 = vmatprep.subr.mxu0 0.0
    %1164 = vmatpush1.msra.mxu0 %v1110
    %1165 = vmatprep.subr.mxu0 0.0
    %1166 = vmatpush1.msra.mxu0 %v1111
    %1167 = vmatprep.subr.mxu0 0.0
    %1168 = vmatpush1.msra.mxu0 %v1112
    %1169 = vmatprep.subr.mxu0 0.0
    %1170 = vmatpush1.msra.mxu0 %v1113
    %1171 = vmatprep.subr.mxu0 0.0
    %1172 = vmatpush1.msra.mxu0 %v1114
    %1173 = vmatprep.subr.mxu0 0.0
    %1174 = vmatpush1.msra.mxu0 %v1115
    %1175 = vmatprep.subr.mxu0 0.0
    %1176 = vmatpush1.msra.mxu0 %v1116
    %1177 = vmatprep.subr.mxu0 0.0
    %1178 = vmatpush1.msra.mxu0 %v1117
    %1179 = vmatprep.subr.mxu0 0.0
    %1180 = vmatpush1.msra.mxu0 %v1118
    %1181 = vmatprep.subr.mxu0 0.0
    %1182 = vmatpush1.msra.mxu0 %v1119
    %1183 = vmatprep.subr.mxu0 0.0
    %1184 = vmatpush1.msra.mxu0 %v1120
    %1185 = vmatprep.mubr.f32.mxu0 %v1086
    %1186 = vmatmul.mubr.f32.gmra.mrb[0].mxu0 %v1084
    %v1187 = vpop.f32.mrb[0].mxu0
    %v1188 = vadd.f32 0.0, %v1187
    %v1189 = vpop.f32.mrb[0].mxu0
    %1190 = vdwg.mxu0
    %v1191 = vadd.f32 %v1009, %v1188
    %v1192 = vld [vmem:[%s6] sm:$0x1]
    %v1194 = vlaneseq
    %v1195 = vshrl.u32 %v1194, 7
    %v1196 = vsub.s32 0, %v1195
    %v1197 = vrot.slane %v1192, %v1196
    %v1199 = vadd.f32 %v1191, %v1197
    %1200 = vst [vmem:[%s8] sm:$0xff] %v1199
    // Predicated region
    $region34: #{_lambda_.1} parent=1 // pred_check
      _
    $region35: #{_lambda_.1} parent=1 // pred_check_branch
      %1202 = sbr.rel (0) target = $region37
    $region36: #{_lambda_.1} parent=1 // pred_region
      _
    $region37: #{_lambda_.1} parent=1 // pred_fallthru
      _
    // Predicated region
    $region38: #{_lambda_.1} parent=1 // pred_check
      _
    $region39: #{_lambda_.1} parent=1 // pred_check_branch
      %1204 = sbr.rel (0) target = $region41
    $region40: #{_lambda_.1} parent=1 // pred_region
      _
    $region41: #{_lambda_.1} parent=1 // pred_fallthru
      _
    // Predicated region
    $region42: #{_lambda_.1} parent=1 // pred_check
      _
    $region43: #{_lambda_.1} parent=1 // pred_check_branch
      %1206 = sbr.rel (0) target = $region45
    $region44: #{_lambda_.1} parent=1 // pred_region
      _
    $region45: #{_lambda_.1} parent=1 // pred_fallthru
      _
    // Predicated region
    $region46: #{_lambda_.1} parent=1 // pred_check
      _
    $region47: #{_lambda_.1} parent=1 // pred_check_branch
      %1208 = sbr.rel (0) target = $region49
    $region48: #{_lambda_.1} parent=1 // pred_region
      _
    $region49: #{_lambda_.1} parent=1 // pred_fallthru
      _
    %1209 = vsyncpa [#allocation3], 1

</llo_original>
